<compile_context>
chip_gen: v7x
topology: tpu7x:2x2x1
jax: 0.10.0
libtpu: 0.0.40
codegen_flags: <defaults>
</compile_context>

<pallas_src>
import jax
import jax.numpy as jnp
from jax.experimental import pallas as pl
from jax.experimental.pallas import tpu as pltpu


# ----------------------------------------------------------------------------
# Pallas kernel 1: fused bidirectional LSTM recurrence.
#   Input gates gx = x @ W_ih + b are precomputed outside (one big GEMM).
#   grid = (2 directions ["parallel"], T // Tc time blocks ["arbitrary"]).
#   The backward direction walks time blocks in reverse via the index_map and
#   reverses within the block, so outputs land in natural time order with no
#   jnp.flip HBM passes.
# ----------------------------------------------------------------------------
def _bilstm_rec_kernel(gx_ref, w_hh_ref, y_ref, h_scr, c_scr):
    Tc, _, _ = gx_ref.shape
    H = h_scr.shape[-1]
    d = pl.program_id(0)              # 0 = forward, 1 = backward

    @pl.when(pl.program_id(1) == 0)
    def _():
        h_scr[...] = jnp.zeros_like(h_scr)
        c_scr[...] = jnp.zeros_like(c_scr)

    w_hh = w_hh_ref[...]              # (H, 4H), resident for the whole block

    def step(t, carry):
        h, c = carry
        # local time index: forward walks 0..Tc-1, backward walks Tc-1..0
        lt = d * (Tc - 1 - t) + (1 - d) * t
        gates = gx_ref[lt] + jnp.dot(h, w_hh,
                                     preferred_element_type=jnp.float32)
        # sigmoid(x) = 0.5 * (tanh(0.5 x) + 1): one EUP push per gate
        i = 0.5 * (jnp.tanh(0.5 * gates[:, 0:H]) + 1.0)
        f = 0.5 * (jnp.tanh(0.5 * gates[:, H:2 * H]) + 1.0)
        g = jnp.tanh(gates[:, 2 * H:3 * H])
        o = 0.5 * (jnp.tanh(0.5 * gates[:, 3 * H:4 * H]) + 1.0)
        c = f * c + i * g
        h = o * jnp.tanh(c)
        y_ref[lt] = h.astype(y_ref.dtype)
        return (h, c)

    h, c = jax.lax.fori_loop(0, Tc, step, (h_scr[...], c_scr[...]),
                             unroll=True)
    h_scr[...] = h
    c_scr[...] = c


def bilstm_recurrence_pallas(gx, w_hh_stack, time_block=32):
    """gx: (2, T, B, 4H) precomputed input gates; w_hh_stack: (2, H, 4H)."""
    _, T, B, H4 = gx.shape
    H = w_hh_stack.shape[1]
    Tc = 1
    for cand in range(min(T, time_block), 0, -1):
        if T % cand == 0:
            Tc = cand
            break
    ntc = T // Tc

    def t_block(d, tc):
        # forward: tc ; backward: ntc - 1 - tc   (pure scalar arithmetic)
        return d * (ntc - 1 - tc) + (1 - d) * tc

    return pl.pallas_call(
        _bilstm_rec_kernel,
        out_shape=jax.ShapeDtypeStruct((2, T, B, H), jnp.float32),
        grid_spec=pltpu.PrefetchScalarGridSpec(
            num_scalar_prefetch=0,
            grid=(2, ntc),
            in_specs=[
                pl.BlockSpec((None, Tc, B, H4),
                             lambda d, tc: (d, t_block(d, tc), 0, 0)),
                pl.BlockSpec((None, H, H4), lambda d, tc: (d, 0, 0)),
            ],
            out_specs=pl.BlockSpec((None, Tc, B, H),
                                   lambda d, tc: (d, t_block(d, tc), 0, 0)),
            scratch_shapes=[pltpu.VMEM((B, H), jnp.float32),
                            pltpu.VMEM((B, H), jnp.float32)],
        ),
        compiler_params=pltpu.CompilerParams(
            dimension_semantics=("parallel", "arbitrary")),
    )(gx, w_hh_stack)


def bilstm_layer_pallas(x_tbd, fwd_params, bwd_params):
    w_ih_f, w_hh_f, b_f = fwd_params
    w_ih_b, w_hh_b, b_b = bwd_params
    # Hoisted input projection: one batched GEMM per direction (XLA / MXU).
    gx_f = jnp.einsum('tbd,dh->tbh', x_tbd, w_ih_f) + b_f
    gx_b = jnp.einsum('tbd,dh->tbh', x_tbd, w_ih_b) + b_b
    gx = jnp.stack([gx_f, gx_b], axis=0)                   # (2, T, B, 4H)
    w_hh = jnp.stack([w_hh_f, w_hh_b], axis=0)             # (2, H, 4H)
    y = bilstm_recurrence_pallas(gx, w_hh)                 # (2, T, B, H)
    return jnp.concatenate([y[0], y[1]], axis=-1)          # (T, B, 2H)


# ------------------------- reference (pure JAX) LSTM -------------------------
def lstm_layer_ref(x_tbd, w_ih, w_hh, b):
    _, B, _ = x_tbd.shape
    H = w_hh.shape[0]

    def step(carry, x_t):
        h, c = carry
        gates = x_t @ w_ih + h @ w_hh + b
        i = jax.nn.sigmoid(gates[:, 0:H])
        f = jax.nn.sigmoid(gates[:, H:2 * H])
        g = jnp.tanh(gates[:, 2 * H:3 * H])
        o = jax.nn.sigmoid(gates[:, 3 * H:4 * H])
        c = f * c + i * g
        h = o * jnp.tanh(c)
        return (h, c), h

    init = (jnp.zeros((B, H), jnp.float32), jnp.zeros((B, H), jnp.float32))
    _, ys = jax.lax.scan(step, init, x_tbd)
    return ys


def bilstm_layer_ref(x_tbd, fwd_params, bwd_params):
    y_f = lstm_layer_ref(x_tbd, *fwd_params)
    y_b = jnp.flip(lstm_layer_ref(jnp.flip(x_tbd, axis=0), *bwd_params),
                   axis=0)
    return jnp.concatenate([y_f, y_b], axis=-1)


# ----------------------------------------------------------------------------
# Pallas kernel 2: aspect attention + classifier head (grid over fragments).
#   memory is fetched straight from en_output via scalar-prefetch indexing;
#   scores = tanh(final @ v + c) with v, c precomputed per fragment; the span
#   half of the classifier logits is also precomputed, so the kernel only adds
#   mix @ W_tag_mix and the log-softmax.
# ----------------------------------------------------------------------------
def _aspect_att_kernel(bidx_ref, mem_ref, pw_ref, mask_ref, v_ref, c_ref,
                       lsp_ref, w_mix_ref, out_ref):
    del bidx_ref  # only consumed by the index_maps
    mem = mem_ref[...]                    # (S, 2H)
    pw = pw_ref[...]                      # (S, 1)
    final = pw * mem                      # (S, 2H)

    # scores = tanh(final @ (W_att @ span) + b_att . span)
    scores = jnp.tanh(
        jnp.dot(final, v_ref[...], preferred_element_type=jnp.float32)
        + c_ref[...])                     # (S, 1)
    scores = jnp.where(mask_ref[...] > 0, -10000.0, scores)

    m = jnp.max(scores, axis=0, keepdims=True)
    e = jnp.exp(scores - m)
    att = e / jnp.sum(e, axis=0, keepdims=True)           # (S, 1)
    mix = jnp.sum(att * final, axis=0, keepdims=True)     # (1, 2H)

    logits = (lsp_ref[...]
              + jnp.dot(mix, w_mix_ref[...],
                        preferred_element_type=jnp.float32))  # (1, T)
    lmax = jnp.max(logits, axis=1, keepdims=True)
    lse = lmax + jnp.log(jnp.sum(jnp.exp(logits - lmax), axis=1,
                                 keepdims=True))
    out_ref[...] = logits - lse


def aspect_attention_pallas(en_output, frag_bidx, pos_weight, mask, span,
                            w_att, b_att, w_tag, b_tag):
    B, S, H2 = en_output.shape
    F = span.shape[0]
    H6 = w_att.shape[1]
    T = w_tag.shape[1]

    # Hoisted batched GEMMs (XLA) — algebraic refactor of the attention score
    # and the span half of the classifier head.
    v = (span @ w_att.T).reshape(F, H2, 1).astype(jnp.float32)   # (F, 2H, 1)
    c = (span @ b_att[0]).reshape(F, 1, 1).astype(jnp.float32)   # (F, 1, 1)
    logits_span = (span @ w_tag[:H6, :] + b_tag).reshape(F, 1, T)
    w_tag_mix = w_tag[H6:, :]                                    # (2H, T)

    pw = pos_weight.reshape(F, S, 1).astype(jnp.float32)
    msk = mask.reshape(F, S, 1).astype(jnp.float32)

    out = pl.pallas_call(
        _aspect_att_kernel,
        out_shape=jax.ShapeDtypeStruct((F, 1, T), jnp.float32),
        grid_spec=pltpu.PrefetchScalarGridSpec(
            num_scalar_prefetch=1,
            grid=(F,),
            in_specs=[
                # en_output indexed per fragment via scalar prefetch: no F×
                # duplication of the encoder output in HBM.
                pl.BlockSpec((None, S, H2), lambda f, bidx: (bidx[f], 0, 0)),
                pl.BlockSpec((None, S, 1), lambda f, bidx: (f, 0, 0)),
                pl.BlockSpec((None, S, 1), lambda f, bidx: (f, 0, 0)),
                pl.BlockSpec((None, H2, 1), lambda f, bidx: (f, 0, 0)),
                pl.BlockSpec((None, 1, 1), lambda f, bidx: (f, 0, 0)),
                pl.BlockSpec((None, 1, T), lambda f, bidx: (f, 0, 0)),
                pl.BlockSpec((H2, T), lambda f, bidx: (0, 0)),
            ],
            out_specs=pl.BlockSpec((None, 1, T), lambda f, bidx: (f, 0, 0)),
        ),
        compiler_params=pltpu.CompilerParams(
            dimension_semantics=("arbitrary",)),
    )(frag_bidx, en_output, pw, msk, v, c, logits_span, w_tag_mix)
    return out.reshape(F, T)


def aspect_attention_ref(en_output, frag_bidx, pos_weight, mask, span,
                         w_att, b_att, w_tag, b_tag):
    memory = en_output[frag_bidx]                         # (F, S, 2H)
    final = pos_weight[:, :, None] * memory
    att_matrix = final @ w_att + b_att
    scores = jnp.tanh(jnp.einsum('fsh,fh->fs', att_matrix, span))
    scores = jnp.where(mask > 0, -10000.0, scores)
    att = jax.nn.softmax(scores, axis=1)
    mix = jnp.einsum('fs,fsh->fh', att, final)
    mix_state = jnp.concatenate([span, mix], axis=1)
    logits = mix_state @ w_tag + b_tag
    return jax.nn.log_softmax(logits, axis=1)


# ----------------------------------------------------------------------------
# Parameter init (deterministic, synthetic) and end-to-end forward (glue)
# ----------------------------------------------------------------------------
def init_params(key, input_dim, hidden_dim, vocab, tagset,
                elmo_dim=256, char_width=50):
    ks = list(jax.random.split(key, 20))

    def w(shape, scale=0.1):
        return (scale * jax.random.normal(ks.pop(0), shape)).astype(jnp.float32)

    params = {
        "hidden_dim": hidden_dim,
        "word_embedding": w((vocab, input_dim)),       # word_embed_weight
        "elmo_proj": w((char_width, elmo_dim)),        # synthetic ELMo stand-in
        "w_att": w((2 * hidden_dim, 6 * hidden_dim)),
        "b_att": w((1, 6 * hidden_dim)),
        "w_tag": w((8 * hidden_dim, tagset)),
        "b_tag": w((1, tagset)),
    }
    lstm = []
    d_in = input_dim + elmo_dim
    for _layer in range(2):
        dirs = []
        for _direction in range(2):
            dirs.append((w((d_in, 4 * hidden_dim)),
                         w((hidden_dim, 4 * hidden_dim)),
                         w((1, 4 * hidden_dim))))
        lstm.append(tuple(dirs))
        d_in = 2 * hidden_dim
    params["lstm"] = lstm
    return params


def aspect_model_forward(params, sens, frags, length, charids, use_pallas=True):
    B, S = sens.shape
    bilstm_fn = bilstm_layer_pallas if use_pallas else bilstm_layer_ref
    att_fn = aspect_attention_pallas if use_pallas else aspect_attention_ref

    # word embedding lookup + synthetic ELMo (glue)
    embed = params["word_embedding"][sens]                     # (B, S, input_dim)
    temp_charids = charids[:, 0:length[0], :]
    elmo_repr = ((temp_charids.astype(jnp.float32) / 260.0 - 0.5)
                 @ params["elmo_proj"])                        # (B, S, 256)
    con_embed = jnp.concatenate([embed, elmo_repr], axis=-1)
    # dropout: eval-mode identity

    # 2-layer bidirectional LSTM (hoisted input GEMM + fused recurrence kernel)
    x = jnp.transpose(con_embed, (1, 0, 2))                    # (S, B, D)
    h1 = bilstm_fn(x, params["lstm"][0][0], params["lstm"][0][1])
    h2 = bilstm_fn(h1, params["lstm"][1][0], params["lstm"][1][1])
    en_output = jnp.transpose(h2, (1, 0, 2))                   # (B, S, 2H)

    # per-fragment feature construction (index arithmetic, mirrors the python
    # loop of the original module); memory is NOT stacked — only a batch index
    # per fragment is recorded and consumed via scalar prefetch in the kernel.
    seq_length = int(length[0])
    pos_id = jnp.arange(seq_length, dtype=jnp.float32)
    word_states, l_states, r_states = [], [], []
    frag_bidx, masks, pos_dises = [], [], []
    for i in range(B):
        for (s, e) in frags[i]:
            word_states.append(jnp.sum(en_output[i, s:e, :], axis=0))
            l_states.append(en_output[i, s, :])
            r_states.append(en_output[i, e - 1, :])
            frag_bidx.append(i)
            m = ((pos_id >= s) & (pos_id < e)) | (pos_id >= length[i])
            masks.append(m.astype(jnp.float32))
            pd = jnp.where(pos_id < s, s - pos_id,
                           jnp.where(pos_id < e, float(seq_length),
                                     pos_id - e + 1.0))
            pos_dises.append(pd)
    word_state = jnp.stack(word_states)                        # (F, 2H)
    l_word_state = jnp.stack(l_states)
    r_word_state = jnp.stack(r_states)
    frag_bidx = jnp.asarray(frag_bidx, dtype=jnp.int32)        # (F,)
    mask = jnp.stack(masks)                                    # (F, S)
    pos_dis = jnp.stack(pos_dises)                             # (F, S)

    span = jnp.concatenate([l_word_state, word_state, r_word_state], axis=1)
    pos_weight = 1.0 - pos_dis / float(seq_length)

    # fused attention + classifier (Pallas kernel)
    label = att_fn(en_output, frag_bidx, pos_weight, mask, span,
                   params["w_att"], params["b_att"],
                   params["w_tag"], params["b_tag"])
    return label                                               # (F, tagset)


if __name__ == "__main__":
    B, S = 2, 8
    input_dim, hidden_dim = 32, 16
    vocab, tagset = 50, 5
    char_width = 50

    key = jax.random.PRNGKey(0)
    pkey, skey, ckey = jax.random.split(key, 3)
    params = init_params(pkey, input_dim, hidden_dim, vocab, tagset,
                         char_width=char_width)

    sens = jax.random.randint(skey, (B, S), 0, vocab, dtype=jnp.int32)
    charids = jax.random.randint(ckey, (B, S, char_width), 0, 262,
                                 dtype=jnp.int32)
    length = [S, S]                       # full-length => packing is identity
    frags = [[(1, 3), (4, 7)], [(0, 4)]]  # total_frag_count = 3

    label = aspect_model_forward(params, sens, frags, length, charids,
                                 use_pallas=True)
    label = jax.block_until_ready(label)

    ref = aspect_model_forward(params, sens, frags, length, charids,
                               use_pallas=False)
    assert label.shape == (3, tagset)
    assert bool(jnp.allclose(label, ref, atol=1e-2, rtol=1e-2))
    print("KERNEL_OK")
</pallas_src>

<mosaic_0001>
module attributes {stable_mosaic.version = 11 : i64} {
  func.func @_bilstm_rec_kernel(%arg0: i32, %arg1: i32, %arg2: memref<1x8x2x64xf32, #tpu.memory_space<vmem>>, %arg3: memref<1x16x64xf32, #tpu.memory_space<vmem>>, %arg4: memref<1x8x2x16xf32, #tpu.memory_space<vmem>>, %arg5: memref<2x16xf32, #tpu.memory_space<vmem>>, %arg6: memref<2x16xf32, #tpu.memory_space<vmem>>) attributes {dimension_semantics = [#tpu.dimension_semantics<parallel>, #tpu.dimension_semantics<arbitrary>], iteration_bounds = array<i64: 2, 1>, scalar_prefetch = 0 : i64, scratch_operands = 2 : i64, tpu.core_type = #tpu.core_type<tc>, window_params = [{transform_indices = @transform_0, window_bounds = array<i64: 1, 8, 2, 64>}, {transform_indices = @transform_1, window_bounds = array<i64: 1, 16, 64>}, {transform_indices = @transform_2, window_bounds = array<i64: 1, 8, 2, 16>}]} {
    %c0_i32 = arith.constant 0 : i32
    %0 = arith.cmpi eq, %arg1, %c0_i32 : i32
    %1 = arith.extui %0 : i1 to i32
    %c0_i32_0 = arith.constant 0 : i32
    %2 = arith.cmpi ne, %1, %c0_i32_0 : i32
    scf.if %2 {
      %cst_155 = arith.constant 0.000000e+00 : f32
      %369 = vector.broadcast %cst_155 : f32 to vector<2x16xf32>
      %c0_156 = arith.constant 0 : index
      %c0_157 = arith.constant 0 : index
      %370 = vector.load %arg5[%c0_156, %c0_157] : memref<2x16xf32, #tpu.memory_space<vmem>>, vector<2x16xf32>
      tpu.vector_store %arg5[%c0_156, %c0_157], %369 {strides = array<i32>} : memref<2x16xf32, #tpu.memory_space<vmem>>, vector<2x16xf32>,
      %cst_158 = arith.constant 0.000000e+00 : f32
      %371 = vector.broadcast %cst_158 : f32 to vector<2x16xf32>
      %c0_159 = arith.constant 0 : index
      %c0_160 = arith.constant 0 : index
      %372 = vector.load %arg6[%c0_159, %c0_160] : memref<2x16xf32, #tpu.memory_space<vmem>>, vector<2x16xf32>
      tpu.vector_store %arg6[%c0_159, %c0_160], %371 {strides = array<i32>} : memref<2x16xf32, #tpu.memory_space<vmem>>, vector<2x16xf32>,
    } else {
    }
    %c0 = arith.constant 0 : index
    %c0_1 = arith.constant 0 : index
    %c0_2 = arith.constant 0 : index
    %3 = vector.load %arg3[%c0, %c0_1, %c0_2] : memref<1x16x64xf32, #tpu.memory_space<vmem>>, vector<1x16x64xf32>
    %4 = vector.shape_cast %3 : vector<1x16x64xf32> to vector<16x64xf32>
    %c0_3 = arith.constant 0 : index
    %c0_4 = arith.constant 0 : index
    %5 = vector.load %arg5[%c0_3, %c0_4] : memref<2x16xf32, #tpu.memory_space<vmem>>, vector<2x16xf32>
    %c0_5 = arith.constant 0 : index
    %c0_6 = arith.constant 0 : index
    %6 = vector.load %arg6[%c0_5, %c0_6] : memref<2x16xf32, #tpu.memory_space<vmem>>, vector<2x16xf32>
    %c0_i32_7 = arith.constant 0 : i32
    %c7_i32 = arith.constant 7 : i32
    %7 = arith.subi %c7_i32, %c0_i32_7 : i32
    %8 = arith.muli %arg0, %7 : i32
    %c1_i32 = arith.constant 1 : i32
    %9 = arith.subi %c1_i32, %arg0 : i32
    %10 = arith.muli %9, %c0_i32_7 : i32
    %11 = arith.addi %8, %10 : i32
    %c0_8 = arith.constant 0 : index
    %12 = arith.index_cast %11 : i32 to index
    %c0_9 = arith.constant 0 : index
    %c0_10 = arith.constant 0 : index
    %13 = vector.load %arg2[%c0_8, %12, %c0_9, %c0_10] : memref<1x8x2x64xf32, #tpu.memory_space<vmem>>, vector<1x1x2x64xf32>
    %14 = vector.shape_cast %13 : vector<1x1x2x64xf32> to vector<2x64xf32>
    %cst = arith.constant dense<0.000000e+00> : vector<2x64xf32>
    %15 = tpu.matmul %5, %4, %cst {dimension_numbers = #tpu.dot_dimension_numbers<[1], [0], [0], [1], [0, 0, 1, 1], [], []>} : vector<2x16xf32>, vector<16x64xf32>, vector<2x64xf32> -> vector<2x64xf32>
    %16 = arith.addf %14, %15 : vector<2x64xf32>
    %17 = vector.extract_strided_slice %16 {offsets = [0, 0], sizes = [2, 16], strides = [1, 1]} : vector<2x64xf32> to vector<2x16xf32>
    %cst_11 = arith.constant 5.000000e-01 : f32
    %18 = vector.broadcast %cst_11 : f32 to vector<2x16xf32>
    %19 = arith.mulf %18, %17 : vector<2x16xf32>
    %20 = math.tanh %19 : vector<2x16xf32>
    %cst_12 = arith.constant 1.000000e+00 : f32
    %21 = vector.broadcast %cst_12 : f32 to vector<2x16xf32>
    %22 = arith.addf %20, %21 : vector<2x16xf32>
    %cst_13 = arith.constant 5.000000e-01 : f32
    %23 = vector.broadcast %cst_13 : f32 to vector<2x16xf32>
    %24 = arith.mulf %23, %22 : vector<2x16xf32>
    %25 = vector.extract_strided_slice %16 {offsets = [0, 16], sizes = [2, 16], strides = [1, 1]} : vector<2x64xf32> to vector<2x16xf32>
    %cst_14 = arith.constant 5.000000e-01 : f32
    %26 = vector.broadcast %cst_14 : f32 to vector<2x16xf32>
    %27 = arith.mulf %26, %25 : vector<2x16xf32>
    %28 = math.tanh %27 : vector<2x16xf32>
    %cst_15 = arith.constant 1.000000e+00 : f32
    %29 = vector.broadcast %cst_15 : f32 to vector<2x16xf32>
    %30 = arith.addf %28, %29 : vector<2x16xf32>
    %cst_16 = arith.constant 5.000000e-01 : f32
    %31 = vector.broadcast %cst_16 : f32 to vector<2x16xf32>
    %32 = arith.mulf %31, %30 : vector<2x16xf32>
    %33 = vector.extract_strided_slice %16 {offsets = [0, 32], sizes = [2, 16], strides = [1, 1]} : vector<2x64xf32> to vector<2x16xf32>
    %34 = math.tanh %33 : vector<2x16xf32>
    %35 = vector.extract_strided_slice %16 {offsets = [0, 48], sizes = [2, 16], strides = [1, 1]} : vector<2x64xf32> to vector<2x16xf32>
    %cst_17 = arith.constant 5.000000e-01 : f32
    %36 = vector.broadcast %cst_17 : f32 to vector<2x16xf32>
    %37 = arith.mulf %36, %35 : vector<2x16xf32>
    %38 = math.tanh %37 : vector<2x16xf32>
    %cst_18 = arith.constant 1.000000e+00 : f32
    %39 = vector.broadcast %cst_18 : f32 to vector<2x16xf32>
    %40 = arith.addf %38, %39 : vector<2x16xf32>
    %cst_19 = arith.constant 5.000000e-01 : f32
    %41 = vector.broadcast %cst_19 : f32 to vector<2x16xf32>
    %42 = arith.mulf %41, %40 : vector<2x16xf32>
    %43 = arith.mulf %32, %6 : vector<2x16xf32>
    %44 = arith.mulf %24, %34 : vector<2x16xf32>
    %45 = arith.addf %43, %44 : vector<2x16xf32>
    %46 = math.tanh %45 : vector<2x16xf32>
    %47 = arith.mulf %42, %46 : vector<2x16xf32>
    %c0_20 = arith.constant 0 : index
    %48 = arith.index_cast %11 : i32 to index
    %c0_21 = arith.constant 0 : index
    %c0_22 = arith.constant 0 : index
    %49 = vector.load %arg4[%c0_20, %48, %c0_21, %c0_22] : memref<1x8x2x16xf32, #tpu.memory_space<vmem>>, vector<1x1x2x16xf32>
    %50 = vector.shape_cast %49 : vector<1x1x2x16xf32> to vector<2x16xf32>
    %51 = vector.shape_cast %47 : vector<2x16xf32> to vector<1x1x2x16xf32>
    tpu.vector_store %arg4[%c0_20, %48, %c0_21, %c0_22], %51 {strides = array<i32>} : memref<1x8x2x16xf32, #tpu.memory_space<vmem>>, vector<1x1x2x16xf32>,
    %c1_i32_23 = arith.constant 1 : i32
    %c7_i32_24 = arith.constant 7 : i32
    %52 = arith.subi %c7_i32_24, %c1_i32_23 : i32
    %53 = arith.muli %arg0, %52 : i32
    %c1_i32_25 = arith.constant 1 : i32
    %54 = arith.subi %c1_i32_25, %arg0 : i32
    %55 = arith.muli %54, %c1_i32_23 : i32
    %56 = arith.addi %53, %55 : i32
    %c0_26 = arith.constant 0 : index
    %57 = arith.index_cast %56 : i32 to index
    %c0_27 = arith.constant 0 : index
    %c0_28 = arith.constant 0 : index
    %58 = vector.load %arg2[%c0_26, %57, %c0_27, %c0_28] : memref<1x8x2x64xf32, #tpu.memory_space<vmem>>, vector<1x1x2x64xf32>
    %59 = vector.shape_cast %58 : vector<1x1x2x64xf32> to vector<2x64xf32>
    %cst_29 = arith.constant dense<0.000000e+00> : vector<2x64xf32>
    %60 = tpu.matmul %47, %4, %cst_29 {dimension_numbers = #tpu.dot_dimension_numbers<[1], [0], [0], [1], [0, 0, 1, 1], [], []>} : vector<2x16xf32>, vector<16x64xf32>, vector<2x64xf32> -> vector<2x64xf32>
    %61 = arith.addf %59, %60 : vector<2x64xf32>
    %62 = vector.extract_strided_slice %61 {offsets = [0, 0], sizes = [2, 16], strides = [1, 1]} : vector<2x64xf32> to vector<2x16xf32>
    %cst_30 = arith.constant 5.000000e-01 : f32
    %63 = vector.broadcast %cst_30 : f32 to vector<2x16xf32>
    %64 = arith.mulf %63, %62 : vector<2x16xf32>
    %65 = math.tanh %64 : vector<2x16xf32>
    %cst_31 = arith.constant 1.000000e+00 : f32
    %66 = vector.broadcast %cst_31 : f32 to vector<2x16xf32>
    %67 = arith.addf %65, %66 : vector<2x16xf32>
    %cst_32 = arith.constant 5.000000e-01 : f32
    %68 = vector.broadcast %cst_32 : f32 to vector<2x16xf32>
    %69 = arith.mulf %68, %67 : vector<2x16xf32>
    %70 = vector.extract_strided_slice %61 {offsets = [0, 16], sizes = [2, 16], strides = [1, 1]} : vector<2x64xf32> to vector<2x16xf32>
    %cst_33 = arith.constant 5.000000e-01 : f32
    %71 = vector.broadcast %cst_33 : f32 to vector<2x16xf32>
    %72 = arith.mulf %71, %70 : vector<2x16xf32>
    %73 = math.tanh %72 : vector<2x16xf32>
    %cst_34 = arith.constant 1.000000e+00 : f32
    %74 = vector.broadcast %cst_34 : f32 to vector<2x16xf32>
    %75 = arith.addf %73, %74 : vector<2x16xf32>
    %cst_35 = arith.constant 5.000000e-01 : f32
    %76 = vector.broadcast %cst_35 : f32 to vector<2x16xf32>
    %77 = arith.mulf %76, %75 : vector<2x16xf32>
    %78 = vector.extract_strided_slice %61 {offsets = [0, 32], sizes = [2, 16], strides = [1, 1]} : vector<2x64xf32> to vector<2x16xf32>
    %79 = math.tanh %78 : vector<2x16xf32>
    %80 = vector.extract_strided_slice %61 {offsets = [0, 48], sizes = [2, 16], strides = [1, 1]} : vector<2x64xf32> to vector<2x16xf32>
    %cst_36 = arith.constant 5.000000e-01 : f32
    %81 = vector.broadcast %cst_36 : f32 to vector<2x16xf32>
    %82 = arith.mulf %81, %80 : vector<2x16xf32>
    %83 = math.tanh %82 : vector<2x16xf32>
    %cst_37 = arith.constant 1.000000e+00 : f32
    %84 = vector.broadcast %cst_37 : f32 to vector<2x16xf32>
    %85 = arith.addf %83, %84 : vector<2x16xf32>
    %cst_38 = arith.constant 5.000000e-01 : f32
    %86 = vector.broadcast %cst_38 : f32 to vector<2x16xf32>
    %87 = arith.mulf %86, %85 : vector<2x16xf32>
    %88 = arith.mulf %77, %45 : vector<2x16xf32>
    %89 = arith.mulf %69, %79 : vector<2x16xf32>
    %90 = arith.addf %88, %89 : vector<2x16xf32>
    %91 = math.tanh %90 : vector<2x16xf32>
    %92 = arith.mulf %87, %91 : vector<2x16xf32>
    %c0_39 = arith.constant 0 : index
    %93 = arith.index_cast %56 : i32 to index
    %c0_40 = arith.constant 0 : index
    %c0_41 = arith.constant 0 : index
    %94 = vector.load %arg4[%c0_39, %93, %c0_40, %c0_41] : memref<1x8x2x16xf32, #tpu.memory_space<vmem>>, vector<1x1x2x16xf32>
    %95 = vector.shape_cast %94 : vector<1x1x2x16xf32> to vector<2x16xf32>
    %96 = vector.shape_cast %92 : vector<2x16xf32> to vector<1x1x2x16xf32>
    tpu.vector_store %arg4[%c0_39, %93, %c0_40, %c0_41], %96 {strides = array<i32>} : memref<1x8x2x16xf32, #tpu.memory_space<vmem>>, vector<1x1x2x16xf32>,
    %c2_i32 = arith.constant 2 : i32
    %c7_i32_42 = arith.constant 7 : i32
    %97 = arith.subi %c7_i32_42, %c2_i32 : i32
    %98 = arith.muli %arg0, %97 : i32
    %c1_i32_43 = arith.constant 1 : i32
    %99 = arith.subi %c1_i32_43, %arg0 : i32
    %100 = arith.muli %99, %c2_i32 : i32
    %101 = arith.addi %98, %100 : i32
    %c0_44 = arith.constant 0 : index
    %102 = arith.index_cast %101 : i32 to index
    %c0_45 = arith.constant 0 : index
    %c0_46 = arith.constant 0 : index
    %103 = vector.load %arg2[%c0_44, %102, %c0_45, %c0_46] : memref<1x8x2x64xf32, #tpu.memory_space<vmem>>, vector<1x1x2x64xf32>
    %104 = vector.shape_cast %103 : vector<1x1x2x64xf32> to vector<2x64xf32>
    %cst_47 = arith.constant dense<0.000000e+00> : vector<2x64xf32>
    %105 = tpu.matmul %92, %4, %cst_47 {dimension_numbers = #tpu.dot_dimension_numbers<[1], [0], [0], [1], [0, 0, 1, 1], [], []>} : vector<2x16xf32>, vector<16x64xf32>, vector<2x64xf32> -> vector<2x64xf32>
    %106 = arith.addf %104, %105 : vector<2x64xf32>
    %107 = vector.extract_strided_slice %106 {offsets = [0, 0], sizes = [2, 16], strides = [1, 1]} : vector<2x64xf32> to vector<2x16xf32>
    %cst_48 = arith.constant 5.000000e-01 : f32
    %108 = vector.broadcast %cst_48 : f32 to vector<2x16xf32>
    %109 = arith.mulf %108, %107 : vector<2x16xf32>
    %110 = math.tanh %109 : vector<2x16xf32>
    %cst_49 = arith.constant 1.000000e+00 : f32
    %111 = vector.broadcast %cst_49 : f32 to vector<2x16xf32>
    %112 = arith.addf %110, %111 : vector<2x16xf32>
    %cst_50 = arith.constant 5.000000e-01 : f32
    %113 = vector.broadcast %cst_50 : f32 to vector<2x16xf32>
    %114 = arith.mulf %113, %112 : vector<2x16xf32>
    %115 = vector.extract_strided_slice %106 {offsets = [0, 16], sizes = [2, 16], strides = [1, 1]} : vector<2x64xf32> to vector<2x16xf32>
    %cst_51 = arith.constant 5.000000e-01 : f32
    %116 = vector.broadcast %cst_51 : f32 to vector<2x16xf32>
    %117 = arith.mulf %116, %115 : vector<2x16xf32>
    %118 = math.tanh %117 : vector<2x16xf32>
    %cst_52 = arith.constant 1.000000e+00 : f32
    %119 = vector.broadcast %cst_52 : f32 to vector<2x16xf32>
    %120 = arith.addf %118, %119 : vector<2x16xf32>
    %cst_53 = arith.constant 5.000000e-01 : f32
    %121 = vector.broadcast %cst_53 : f32 to vector<2x16xf32>
    %122 = arith.mulf %121, %120 : vector<2x16xf32>
    %123 = vector.extract_strided_slice %106 {offsets = [0, 32], sizes = [2, 16], strides = [1, 1]} : vector<2x64xf32> to vector<2x16xf32>
    %124 = math.tanh %123 : vector<2x16xf32>
    %125 = vector.extract_strided_slice %106 {offsets = [0, 48], sizes = [2, 16], strides = [1, 1]} : vector<2x64xf32> to vector<2x16xf32>
    %cst_54 = arith.constant 5.000000e-01 : f32
    %126 = vector.broadcast %cst_54 : f32 to vector<2x16xf32>
    %127 = arith.mulf %126, %125 : vector<2x16xf32>
    %128 = math.tanh %127 : vector<2x16xf32>
    %cst_55 = arith.constant 1.000000e+00 : f32
    %129 = vector.broadcast %cst_55 : f32 to vector<2x16xf32>
    %130 = arith.addf %128, %129 : vector<2x16xf32>
    %cst_56 = arith.constant 5.000000e-01 : f32
    %131 = vector.broadcast %cst_56 : f32 to vector<2x16xf32>
    %132 = arith.mulf %131, %130 : vector<2x16xf32>
    %133 = arith.mulf %122, %90 : vector<2x16xf32>
    %134 = arith.mulf %114, %124 : vector<2x16xf32>
    %135 = arith.addf %133, %134 : vector<2x16xf32>
    %136 = math.tanh %135 : vector<2x16xf32>
    %137 = arith.mulf %132, %136 : vector<2x16xf32>
    %c0_57 = arith.constant 0 : index
    %138 = arith.index_cast %101 : i32 to index
    %c0_58 = arith.constant 0 : index
    %c0_59 = arith.constant 0 : index
    %139 = vector.load %arg4[%c0_57, %138, %c0_58, %c0_59] : memref<1x8x2x16xf32, #tpu.memory_space<vmem>>, vector<1x1x2x16xf32>
    %140 = vector.shape_cast %139 : vector<1x1x2x16xf32> to vector<2x16xf32>
    %141 = vector.shape_cast %137 : vector<2x16xf32> to vector<1x1x2x16xf32>
    tpu.vector_store %arg4[%c0_57, %138, %c0_58, %c0_59], %141 {strides = array<i32>} : memref<1x8x2x16xf32, #tpu.memory_space<vmem>>, vector<1x1x2x16xf32>,
    %c3_i32 = arith.constant 3 : i32
    %c7_i32_60 = arith.constant 7 : i32
    %142 = arith.subi %c7_i32_60, %c3_i32 : i32
    %143 = arith.muli %arg0, %142 : i32
    %c1_i32_61 = arith.constant 1 : i32
    %144 = arith.subi %c1_i32_61, %arg0 : i32
    %145 = arith.muli %144, %c3_i32 : i32
    %146 = arith.addi %143, %145 : i32
    %c0_62 = arith.constant 0 : index
    %147 = arith.index_cast %146 : i32 to index
    %c0_63 = arith.constant 0 : index
    %c0_64 = arith.constant 0 : index
    %148 = vector.load %arg2[%c0_62, %147, %c0_63, %c0_64] : memref<1x8x2x64xf32, #tpu.memory_space<vmem>>, vector<1x1x2x64xf32>
    %149 = vector.shape_cast %148 : vector<1x1x2x64xf32> to vector<2x64xf32>
    %cst_65 = arith.constant dense<0.000000e+00> : vector<2x64xf32>
    %150 = tpu.matmul %137, %4, %cst_65 {dimension_numbers = #tpu.dot_dimension_numbers<[1], [0], [0], [1], [0, 0, 1, 1], [], []>} : vector<2x16xf32>, vector<16x64xf32>, vector<2x64xf32> -> vector<2x64xf32>
    %151 = arith.addf %149, %150 : vector<2x64xf32>
    %152 = vector.extract_strided_slice %151 {offsets = [0, 0], sizes = [2, 16], strides = [1, 1]} : vector<2x64xf32> to vector<2x16xf32>
    %cst_66 = arith.constant 5.000000e-01 : f32
    %153 = vector.broadcast %cst_66 : f32 to vector<2x16xf32>
    %154 = arith.mulf %153, %152 : vector<2x16xf32>
    %155 = math.tanh %154 : vector<2x16xf32>
    %cst_67 = arith.constant 1.000000e+00 : f32
    %156 = vector.broadcast %cst_67 : f32 to vector<2x16xf32>
    %157 = arith.addf %155, %156 : vector<2x16xf32>
    %cst_68 = arith.constant 5.000000e-01 : f32
    %158 = vector.broadcast %cst_68 : f32 to vector<2x16xf32>
    %159 = arith.mulf %158, %157 : vector<2x16xf32>
    %160 = vector.extract_strided_slice %151 {offsets = [0, 16], sizes = [2, 16], strides = [1, 1]} : vector<2x64xf32> to vector<2x16xf32>
    %cst_69 = arith.constant 5.000000e-01 : f32
    %161 = vector.broadcast %cst_69 : f32 to vector<2x16xf32>
    %162 = arith.mulf %161, %160 : vector<2x16xf32>
    %163 = math.tanh %162 : vector<2x16xf32>
    %cst_70 = arith.constant 1.000000e+00 : f32
    %164 = vector.broadcast %cst_70 : f32 to vector<2x16xf32>
    %165 = arith.addf %163, %164 : vector<2x16xf32>
    %cst_71 = arith.constant 5.000000e-01 : f32
    %166 = vector.broadcast %cst_71 : f32 to vector<2x16xf32>
    %167 = arith.mulf %166, %165 : vector<2x16xf32>
    %168 = vector.extract_strided_slice %151 {offsets = [0, 32], sizes = [2, 16], strides = [1, 1]} : vector<2x64xf32> to vector<2x16xf32>
    %169 = math.tanh %168 : vector<2x16xf32>
    %170 = vector.extract_strided_slice %151 {offsets = [0, 48], sizes = [2, 16], strides = [1, 1]} : vector<2x64xf32> to vector<2x16xf32>
    %cst_72 = arith.constant 5.000000e-01 : f32
    %171 = vector.broadcast %cst_72 : f32 to vector<2x16xf32>
    %172 = arith.mulf %171, %170 : vector<2x16xf32>
    %173 = math.tanh %172 : vector<2x16xf32>
    %cst_73 = arith.constant 1.000000e+00 : f32
    %174 = vector.broadcast %cst_73 : f32 to vector<2x16xf32>
    %175 = arith.addf %173, %174 : vector<2x16xf32>
    %cst_74 = arith.constant 5.000000e-01 : f32
    %176 = vector.broadcast %cst_74 : f32 to vector<2x16xf32>
    %177 = arith.mulf %176, %175 : vector<2x16xf32>
    %178 = arith.mulf %167, %135 : vector<2x16xf32>
    %179 = arith.mulf %159, %169 : vector<2x16xf32>
    %180 = arith.addf %178, %179 : vector<2x16xf32>
    %181 = math.tanh %180 : vector<2x16xf32>
    %182 = arith.mulf %177, %181 : vector<2x16xf32>
    %c0_75 = arith.constant 0 : index
    %183 = arith.index_cast %146 : i32 to index
    %c0_76 = arith.constant 0 : index
    %c0_77 = arith.constant 0 : index
    %184 = vector.load %arg4[%c0_75, %183, %c0_76, %c0_77] : memref<1x8x2x16xf32, #tpu.memory_space<vmem>>, vector<1x1x2x16xf32>
    %185 = vector.shape_cast %184 : vector<1x1x2x16xf32> to vector<2x16xf32>
    %186 = vector.shape_cast %182 : vector<2x16xf32> to vector<1x1x2x16xf32>
    tpu.vector_store %arg4[%c0_75, %183, %c0_76, %c0_77], %186 {strides = array<i32>} : memref<1x8x2x16xf32, #tpu.memory_space<vmem>>, vector<1x1x2x16xf32>,
    %c4_i32 = arith.constant 4 : i32
    %c7_i32_78 = arith.constant 7 : i32
    %187 = arith.subi %c7_i32_78, %c4_i32 : i32
    %188 = arith.muli %arg0, %187 : i32
    %c1_i32_79 = arith.constant 1 : i32
    %189 = arith.subi %c1_i32_79, %arg0 : i32
    %190 = arith.muli %189, %c4_i32 : i32
    %191 = arith.addi %188, %190 : i32
    %c0_80 = arith.constant 0 : index
    %192 = arith.index_cast %191 : i32 to index
    %c0_81 = arith.constant 0 : index
    %c0_82 = arith.constant 0 : index
    %193 = vector.load %arg2[%c0_80, %192, %c0_81, %c0_82] : memref<1x8x2x64xf32, #tpu.memory_space<vmem>>, vector<1x1x2x64xf32>
    %194 = vector.shape_cast %193 : vector<1x1x2x64xf32> to vector<2x64xf32>
    %cst_83 = arith.constant dense<0.000000e+00> : vector<2x64xf32>
    %195 = tpu.matmul %182, %4, %cst_83 {dimension_numbers = #tpu.dot_dimension_numbers<[1], [0], [0], [1], [0, 0, 1, 1], [], []>} : vector<2x16xf32>, vector<16x64xf32>, vector<2x64xf32> -> vector<2x64xf32>
    %196 = arith.addf %194, %195 : vector<2x64xf32>
    %197 = vector.extract_strided_slice %196 {offsets = [0, 0], sizes = [2, 16], strides = [1, 1]} : vector<2x64xf32> to vector<2x16xf32>
    %cst_84 = arith.constant 5.000000e-01 : f32
    %198 = vector.broadcast %cst_84 : f32 to vector<2x16xf32>
    %199 = arith.mulf %198, %197 : vector<2x16xf32>
    %200 = math.tanh %199 : vector<2x16xf32>
    %cst_85 = arith.constant 1.000000e+00 : f32
    %201 = vector.broadcast %cst_85 : f32 to vector<2x16xf32>
    %202 = arith.addf %200, %201 : vector<2x16xf32>
    %cst_86 = arith.constant 5.000000e-01 : f32
    %203 = vector.broadcast %cst_86 : f32 to vector<2x16xf32>
    %204 = arith.mulf %203, %202 : vector<2x16xf32>
    %205 = vector.extract_strided_slice %196 {offsets = [0, 16], sizes = [2, 16], strides = [1, 1]} : vector<2x64xf32> to vector<2x16xf32>
    %cst_87 = arith.constant 5.000000e-01 : f32
    %206 = vector.broadcast %cst_87 : f32 to vector<2x16xf32>
    %207 = arith.mulf %206, %205 : vector<2x16xf32>
    %208 = math.tanh %207 : vector<2x16xf32>
    %cst_88 = arith.constant 1.000000e+00 : f32
    %209 = vector.broadcast %cst_88 : f32 to vector<2x16xf32>
    %210 = arith.addf %208, %209 : vector<2x16xf32>
    %cst_89 = arith.constant 5.000000e-01 : f32
    %211 = vector.broadcast %cst_89 : f32 to vector<2x16xf32>
    %212 = arith.mulf %211, %210 : vector<2x16xf32>
    %213 = vector.extract_strided_slice %196 {offsets = [0, 32], sizes = [2, 16], strides = [1, 1]} : vector<2x64xf32> to vector<2x16xf32>
    %214 = math.tanh %213 : vector<2x16xf32>
    %215 = vector.extract_strided_slice %196 {offsets = [0, 48], sizes = [2, 16], strides = [1, 1]} : vector<2x64xf32> to vector<2x16xf32>
    %cst_90 = arith.constant 5.000000e-01 : f32
    %216 = vector.broadcast %cst_90 : f32 to vector<2x16xf32>
    %217 = arith.mulf %216, %215 : vector<2x16xf32>
    %218 = math.tanh %217 : vector<2x16xf32>
    %cst_91 = arith.constant 1.000000e+00 : f32
    %219 = vector.broadcast %cst_91 : f32 to vector<2x16xf32>
    %220 = arith.addf %218, %219 : vector<2x16xf32>
    %cst_92 = arith.constant 5.000000e-01 : f32
    %221 = vector.broadcast %cst_92 : f32 to vector<2x16xf32>
    %222 = arith.mulf %221, %220 : vector<2x16xf32>
    %223 = arith.mulf %212, %180 : vector<2x16xf32>
    %224 = arith.mulf %204, %214 : vector<2x16xf32>
    %225 = arith.addf %223, %224 : vector<2x16xf32>
    %226 = math.tanh %225 : vector<2x16xf32>
    %227 = arith.mulf %222, %226 : vector<2x16xf32>
    %c0_93 = arith.constant 0 : index
    %228 = arith.index_cast %191 : i32 to index
    %c0_94 = arith.constant 0 : index
    %c0_95 = arith.constant 0 : index
    %229 = vector.load %arg4[%c0_93, %228, %c0_94, %c0_95] : memref<1x8x2x16xf32, #tpu.memory_space<vmem>>, vector<1x1x2x16xf32>
    %230 = vector.shape_cast %229 : vector<1x1x2x16xf32> to vector<2x16xf32>
    %231 = vector.shape_cast %227 : vector<2x16xf32> to vector<1x1x2x16xf32>
    tpu.vector_store %arg4[%c0_93, %228, %c0_94, %c0_95], %231 {strides = array<i32>} : memref<1x8x2x16xf32, #tpu.memory_space<vmem>>, vector<1x1x2x16xf32>,
    %c5_i32 = arith.constant 5 : i32
    %c7_i32_96 = arith.constant 7 : i32
    %232 = arith.subi %c7_i32_96, %c5_i32 : i32
    %233 = arith.muli %arg0, %232 : i32
    %c1_i32_97 = arith.constant 1 : i32
    %234 = arith.subi %c1_i32_97, %arg0 : i32
    %235 = arith.muli %234, %c5_i32 : i32
    %236 = arith.addi %233, %235 : i32
    %c0_98 = arith.constant 0 : index
    %237 = arith.index_cast %236 : i32 to index
    %c0_99 = arith.constant 0 : index
    %c0_100 = arith.constant 0 : index
    %238 = vector.load %arg2[%c0_98, %237, %c0_99, %c0_100] : memref<1x8x2x64xf32, #tpu.memory_space<vmem>>, vector<1x1x2x64xf32>
    %239 = vector.shape_cast %238 : vector<1x1x2x64xf32> to vector<2x64xf32>
    %cst_101 = arith.constant dense<0.000000e+00> : vector<2x64xf32>
    %240 = tpu.matmul %227, %4, %cst_101 {dimension_numbers = #tpu.dot_dimension_numbers<[1], [0], [0], [1], [0, 0, 1, 1], [], []>} : vector<2x16xf32>, vector<16x64xf32>, vector<2x64xf32> -> vector<2x64xf32>
    %241 = arith.addf %239, %240 : vector<2x64xf32>
    %242 = vector.extract_strided_slice %241 {offsets = [0, 0], sizes = [2, 16], strides = [1, 1]} : vector<2x64xf32> to vector<2x16xf32>
    %cst_102 = arith.constant 5.000000e-01 : f32
    %243 = vector.broadcast %cst_102 : f32 to vector<2x16xf32>
    %244 = arith.mulf %243, %242 : vector<2x16xf32>
    %245 = math.tanh %244 : vector<2x16xf32>
    %cst_103 = arith.constant 1.000000e+00 : f32
    %246 = vector.broadcast %cst_103 : f32 to vector<2x16xf32>
    %247 = arith.addf %245, %246 : vector<2x16xf32>
    %cst_104 = arith.constant 5.000000e-01 : f32
    %248 = vector.broadcast %cst_104 : f32 to vector<2x16xf32>
    %249 = arith.mulf %248, %247 : vector<2x16xf32>
    %250 = vector.extract_strided_slice %241 {offsets = [0, 16], sizes = [2, 16], strides = [1, 1]} : vector<2x64xf32> to vector<2x16xf32>
    %cst_105 = arith.constant 5.000000e-01 : f32
    %251 = vector.broadcast %cst_105 : f32 to vector<2x16xf32>
    %252 = arith.mulf %251, %250 : vector<2x16xf32>
    %253 = math.tanh %252 : vector<2x16xf32>
    %cst_106 = arith.constant 1.000000e+00 : f32
    %254 = vector.broadcast %cst_106 : f32 to vector<2x16xf32>
    %255 = arith.addf %253, %254 : vector<2x16xf32>
    %cst_107 = arith.constant 5.000000e-01 : f32
    %256 = vector.broadcast %cst_107 : f32 to vector<2x16xf32>
    %257 = arith.mulf %256, %255 : vector<2x16xf32>
    %258 = vector.extract_strided_slice %241 {offsets = [0, 32], sizes = [2, 16], strides = [1, 1]} : vector<2x64xf32> to vector<2x16xf32>
    %259 = math.tanh %258 : vector<2x16xf32>
    %260 = vector.extract_strided_slice %241 {offsets = [0, 48], sizes = [2, 16], strides = [1, 1]} : vector<2x64xf32> to vector<2x16xf32>
    %cst_108 = arith.constant 5.000000e-01 : f32
    %261 = vector.broadcast %cst_108 : f32 to vector<2x16xf32>
    %262 = arith.mulf %261, %260 : vector<2x16xf32>
    %263 = math.tanh %262 : vector<2x16xf32>
    %cst_109 = arith.constant 1.000000e+00 : f32
    %264 = vector.broadcast %cst_109 : f32 to vector<2x16xf32>
    %265 = arith.addf %263, %264 : vector<2x16xf32>
    %cst_110 = arith.constant 5.000000e-01 : f32
    %266 = vector.broadcast %cst_110 : f32 to vector<2x16xf32>
    %267 = arith.mulf %266, %265 : vector<2x16xf32>
    %268 = arith.mulf %257, %225 : vector<2x16xf32>
    %269 = arith.mulf %249, %259 : vector<2x16xf32>
    %270 = arith.addf %268, %269 : vector<2x16xf32>
    %271 = math.tanh %270 : vector<2x16xf32>
    %272 = arith.mulf %267, %271 : vector<2x16xf32>
    %c0_111 = arith.constant 0 : index
    %273 = arith.index_cast %236 : i32 to index
    %c0_112 = arith.constant 0 : index
    %c0_113 = arith.constant 0 : index
    %274 = vector.load %arg4[%c0_111, %273, %c0_112, %c0_113] : memref<1x8x2x16xf32, #tpu.memory_space<vmem>>, vector<1x1x2x16xf32>
    %275 = vector.shape_cast %274 : vector<1x1x2x16xf32> to vector<2x16xf32>
    %276 = vector.shape_cast %272 : vector<2x16xf32> to vector<1x1x2x16xf32>
    tpu.vector_store %arg4[%c0_111, %273, %c0_112, %c0_113], %276 {strides = array<i32>} : memref<1x8x2x16xf32, #tpu.memory_space<vmem>>, vector<1x1x2x16xf32>,
    %c6_i32 = arith.constant 6 : i32
    %c7_i32_114 = arith.constant 7 : i32
    %277 = arith.subi %c7_i32_114, %c6_i32 : i32
    %278 = arith.muli %arg0, %277 : i32
    %c1_i32_115 = arith.constant 1 : i32
    %279 = arith.subi %c1_i32_115, %arg0 : i32
    %280 = arith.muli %279, %c6_i32 : i32
    %281 = arith.addi %278, %280 : i32
    %c0_116 = arith.constant 0 : index
    %282 = arith.index_cast %281 : i32 to index
    %c0_117 = arith.constant 0 : index
    %c0_118 = arith.constant 0 : index
    %283 = vector.load %arg2[%c0_116, %282, %c0_117, %c0_118] : memref<1x8x2x64xf32, #tpu.memory_space<vmem>>, vector<1x1x2x64xf32>
    %284 = vector.shape_cast %283 : vector<1x1x2x64xf32> to vector<2x64xf32>
    %cst_119 = arith.constant dense<0.000000e+00> : vector<2x64xf32>
    %285 = tpu.matmul %272, %4, %cst_119 {dimension_numbers = #tpu.dot_dimension_numbers<[1], [0], [0], [1], [0, 0, 1, 1], [], []>} : vector<2x16xf32>, vector<16x64xf32>, vector<2x64xf32> -> vector<2x64xf32>
    %286 = arith.addf %284, %285 : vector<2x64xf32>
    %287 = vector.extract_strided_slice %286 {offsets = [0, 0], sizes = [2, 16], strides = [1, 1]} : vector<2x64xf32> to vector<2x16xf32>
    %cst_120 = arith.constant 5.000000e-01 : f32
    %288 = vector.broadcast %cst_120 : f32 to vector<2x16xf32>
    %289 = arith.mulf %288, %287 : vector<2x16xf32>
    %290 = math.tanh %289 : vector<2x16xf32>
    %cst_121 = arith.constant 1.000000e+00 : f32
    %291 = vector.broadcast %cst_121 : f32 to vector<2x16xf32>
    %292 = arith.addf %290, %291 : vector<2x16xf32>
    %cst_122 = arith.constant 5.000000e-01 : f32
    %293 = vector.broadcast %cst_122 : f32 to vector<2x16xf32>
    %294 = arith.mulf %293, %292 : vector<2x16xf32>
    %295 = vector.extract_strided_slice %286 {offsets = [0, 16], sizes = [2, 16], strides = [1, 1]} : vector<2x64xf32> to vector<2x16xf32>
    %cst_123 = arith.constant 5.000000e-01 : f32
    %296 = vector.broadcast %cst_123 : f32 to vector<2x16xf32>
    %297 = arith.mulf %296, %295 : vector<2x16xf32>
    %298 = math.tanh %297 : vector<2x16xf32>
    %cst_124 = arith.constant 1.000000e+00 : f32
    %299 = vector.broadcast %cst_124 : f32 to vector<2x16xf32>
    %300 = arith.addf %298, %299 : vector<2x16xf32>
    %cst_125 = arith.constant 5.000000e-01 : f32
    %301 = vector.broadcast %cst_125 : f32 to vector<2x16xf32>
    %302 = arith.mulf %301, %300 : vector<2x16xf32>
    %303 = vector.extract_strided_slice %286 {offsets = [0, 32], sizes = [2, 16], strides = [1, 1]} : vector<2x64xf32> to vector<2x16xf32>
    %304 = math.tanh %303 : vector<2x16xf32>
    %305 = vector.extract_strided_slice %286 {offsets = [0, 48], sizes = [2, 16], strides = [1, 1]} : vector<2x64xf32> to vector<2x16xf32>
    %cst_126 = arith.constant 5.000000e-01 : f32
    %306 = vector.broadcast %cst_126 : f32 to vector<2x16xf32>
    %307 = arith.mulf %306, %305 : vector<2x16xf32>
    %308 = math.tanh %307 : vector<2x16xf32>
    %cst_127 = arith.constant 1.000000e+00 : f32
    %309 = vector.broadcast %cst_127 : f32 to vector<2x16xf32>
    %310 = arith.addf %308, %309 : vector<2x16xf32>
    %cst_128 = arith.constant 5.000000e-01 : f32
    %311 = vector.broadcast %cst_128 : f32 to vector<2x16xf32>
    %312 = arith.mulf %311, %310 : vector<2x16xf32>
    %313 = arith.mulf %302, %270 : vector<2x16xf32>
    %314 = arith.mulf %294, %304 : vector<2x16xf32>
    %315 = arith.addf %313, %314 : vector<2x16xf32>
    %316 = math.tanh %315 : vector<2x16xf32>
    %317 = arith.mulf %312, %316 : vector<2x16xf32>
    %c0_129 = arith.constant 0 : index
    %318 = arith.index_cast %281 : i32 to index
    %c0_130 = arith.constant 0 : index
    %c0_131 = arith.constant 0 : index
    %319 = vector.load %arg4[%c0_129, %318, %c0_130, %c0_131] : memref<1x8x2x16xf32, #tpu.memory_space<vmem>>, vector<1x1x2x16xf32>
    %320 = vector.shape_cast %319 : vector<1x1x2x16xf32> to vector<2x16xf32>
    %321 = vector.shape_cast %317 : vector<2x16xf32> to vector<1x1x2x16xf32>
    tpu.vector_store %arg4[%c0_129, %318, %c0_130, %c0_131], %321 {strides = array<i32>} : memref<1x8x2x16xf32, #tpu.memory_space<vmem>>, vector<1x1x2x16xf32>,
    %c7_i32_132 = arith.constant 7 : i32
    %c7_i32_133 = arith.constant 7 : i32
    %322 = arith.subi %c7_i32_133, %c7_i32_132 : i32
    %323 = arith.muli %arg0, %322 : i32
    %c1_i32_134 = arith.constant 1 : i32
    %324 = arith.subi %c1_i32_134, %arg0 : i32
    %325 = arith.muli %324, %c7_i32_132 : i32
    %326 = arith.addi %323, %325 : i32
    %c0_135 = arith.constant 0 : index
    %327 = arith.index_cast %326 : i32 to index
    %c0_136 = arith.constant 0 : index
    %c0_137 = arith.constant 0 : index
    %328 = vector.load %arg2[%c0_135, %327, %c0_136, %c0_137] : memref<1x8x2x64xf32, #tpu.memory_space<vmem>>, vector<1x1x2x64xf32>
    %329 = vector.shape_cast %328 : vector<1x1x2x64xf32> to vector<2x64xf32>
    %cst_138 = arith.constant dense<0.000000e+00> : vector<2x64xf32>
    %330 = tpu.matmul %317, %4, %cst_138 {dimension_numbers = #tpu.dot_dimension_numbers<[1], [0], [0], [1], [0, 0, 1, 1], [], []>} : vector<2x16xf32>, vector<16x64xf32>, vector<2x64xf32> -> vector<2x64xf32>
    %331 = arith.addf %329, %330 : vector<2x64xf32>
    %332 = vector.extract_strided_slice %331 {offsets = [0, 0], sizes = [2, 16], strides = [1, 1]} : vector<2x64xf32> to vector<2x16xf32>
    %cst_139 = arith.constant 5.000000e-01 : f32
    %333 = vector.broadcast %cst_139 : f32 to vector<2x16xf32>
    %334 = arith.mulf %333, %332 : vector<2x16xf32>
    %335 = math.tanh %334 : vector<2x16xf32>
    %cst_140 = arith.constant 1.000000e+00 : f32
    %336 = vector.broadcast %cst_140 : f32 to vector<2x16xf32>
    %337 = arith.addf %335, %336 : vector<2x16xf32>
    %cst_141 = arith.constant 5.000000e-01 : f32
    %338 = vector.broadcast %cst_141 : f32 to vector<2x16xf32>
    %339 = arith.mulf %338, %337 : vector<2x16xf32>
    %340 = vector.extract_strided_slice %331 {offsets = [0, 16], sizes = [2, 16], strides = [1, 1]} : vector<2x64xf32> to vector<2x16xf32>
    %cst_142 = arith.constant 5.000000e-01 : f32
    %341 = vector.broadcast %cst_142 : f32 to vector<2x16xf32>
    %342 = arith.mulf %341, %340 : vector<2x16xf32>
    %343 = math.tanh %342 : vector<2x16xf32>
    %cst_143 = arith.constant 1.000000e+00 : f32
    %344 = vector.broadcast %cst_143 : f32 to vector<2x16xf32>
    %345 = arith.addf %343, %344 : vector<2x16xf32>
    %cst_144 = arith.constant 5.000000e-01 : f32
    %346 = vector.broadcast %cst_144 : f32 to vector<2x16xf32>
    %347 = arith.mulf %346, %345 : vector<2x16xf32>
    %348 = vector.extract_strided_slice %331 {offsets = [0, 32], sizes = [2, 16], strides = [1, 1]} : vector<2x64xf32> to vector<2x16xf32>
    %349 = math.tanh %348 : vector<2x16xf32>
    %350 = vector.extract_strided_slice %331 {offsets = [0, 48], sizes = [2, 16], strides = [1, 1]} : vector<2x64xf32> to vector<2x16xf32>
    %cst_145 = arith.constant 5.000000e-01 : f32
    %351 = vector.broadcast %cst_145 : f32 to vector<2x16xf32>
    %352 = arith.mulf %351, %350 : vector<2x16xf32>
    %353 = math.tanh %352 : vector<2x16xf32>
    %cst_146 = arith.constant 1.000000e+00 : f32
    %354 = vector.broadcast %cst_146 : f32 to vector<2x16xf32>
    %355 = arith.addf %353, %354 : vector<2x16xf32>
    %cst_147 = arith.constant 5.000000e-01 : f32
    %356 = vector.broadcast %cst_147 : f32 to vector<2x16xf32>
    %357 = arith.mulf %356, %355 : vector<2x16xf32>
    %358 = arith.mulf %347, %315 : vector<2x16xf32>
    %359 = arith.mulf %339, %349 : vector<2x16xf32>
    %360 = arith.addf %358, %359 : vector<2x16xf32>
    %361 = math.tanh %360 : vector<2x16xf32>
    %362 = arith.mulf %357, %361 : vector<2x16xf32>
    %c0_148 = arith.constant 0 : index
    %363 = arith.index_cast %326 : i32 to index
    %c0_149 = arith.constant 0 : index
    %c0_150 = arith.constant 0 : index
    %364 = vector.load %arg4[%c0_148, %363, %c0_149, %c0_150] : memref<1x8x2x16xf32, #tpu.memory_space<vmem>>, vector<1x1x2x16xf32>
    %365 = vector.shape_cast %364 : vector<1x1x2x16xf32> to vector<2x16xf32>
    %366 = vector.shape_cast %362 : vector<2x16xf32> to vector<1x1x2x16xf32>
    tpu.vector_store %arg4[%c0_148, %363, %c0_149, %c0_150], %366 {strides = array<i32>} : memref<1x8x2x16xf32, #tpu.memory_space<vmem>>, vector<1x1x2x16xf32>,
    %c8_i32 = arith.constant 8 : i32
    %c0_151 = arith.constant 0 : index
    %c0_152 = arith.constant 0 : index
    %367 = vector.load %arg5[%c0_151, %c0_152] : memref<2x16xf32, #tpu.memory_space<vmem>>, vector<2x16xf32>
    tpu.vector_store %arg5[%c0_151, %c0_152], %362 {strides = array<i32>} : memref<2x16xf32, #tpu.memory_space<vmem>>, vector<2x16xf32>,
    %c0_153 = arith.constant 0 : index
    %c0_154 = arith.constant 0 : index
    %368 = vector.load %arg6[%c0_153, %c0_154] : memref<2x16xf32, #tpu.memory_space<vmem>>, vector<2x16xf32>
    tpu.vector_store %arg6[%c0_153, %c0_154], %360 {strides = array<i32>} : memref<2x16xf32, #tpu.memory_space<vmem>>, vector<2x16xf32>,
    return
  }
  func.func @transform_0(%arg0: i32, %arg1: i32) -> (i32, i32, i32, i32) {
    %c0_i32 = arith.constant 0 : i32
    %0 = arith.subi %c0_i32, %arg1 : i32
    %1 = arith.muli %arg0, %0 : i32
    %c1_i32 = arith.constant 1 : i32
    %2 = arith.subi %c1_i32, %arg0 : i32
    %3 = arith.muli %2, %arg1 : i32
    %4 = arith.addi %1, %3 : i32
    %c0_i32_0 = arith.constant 0 : i32
    %c0_i32_1 = arith.constant 0 : i32
    %c0_i32_2 = arith.constant 0 : i32
    return %arg0, %4, %c0_i32_0, %c0_i32_1 : i32, i32, i32, i32
  }
  func.func @transform_1(%arg0: i32, %arg1: i32) -> (i32, i32, i32) {
    %c0_i32 = arith.constant 0 : i32
    %c0_i32_0 = arith.constant 0 : i32
    %c0_i32_1 = arith.constant 0 : i32
    return %arg0, %c0_i32, %c0_i32_0 : i32, i32, i32
  }
  func.func @transform_2(%arg0: i32, %arg1: i32) -> (i32, i32, i32, i32) {
    %c0_i32 = arith.constant 0 : i32
    %0 = arith.subi %c0_i32, %arg1 : i32
    %1 = arith.muli %arg0, %0 : i32
    %c1_i32 = arith.constant 1 : i32
    %2 = arith.subi %c1_i32, %arg0 : i32
    %3 = arith.muli %2, %arg1 : i32
    %4 = arith.addi %1, %3 : i32
    %c0_i32_0 = arith.constant 0 : i32
    %c0_i32_1 = arith.constant 0 : i32
    %c0_i32_2 = arith.constant 0 : i32
    return %arg0, %4, %c0_i32_0, %c0_i32_1 : i32, i32, i32, i32
  }
}

</mosaic_0001>

<llo_original>
// kernel: tpu_custom_call.1
$region0: #{tpu_custom_call.1}
  #allocation0 [shape = 'u32[]', space=smem, size = 0x4, offset = 0x4, fixed_abs, tag = 'smem constant byte address 0x4 - core index']
  #allocation1 [shape = 'u32[144,128]{1,0:T(1,128)}', space=vmem, size = 0x12000, scoped, tag = 'internal scratch']
  #allocation2 [shape = 'f32[2,16]{1,0:T(2,128)}', space=vmem, size = 0x400, scoped, tag = 'scratch operand']
  #allocation3 [shape = 'f32[2,16]{1,0:T(2,128)}', space=vmem, size = 0x400, scoped, tag = 'scratch operand']
  %s0 = inlined_call_operand.hbm [shape: f32[2,8,2,64], index: 0, kind: input, shape index: {}]
  %s1 = inlined_call_operand.hbm [shape: f32[2,16,64], index: 1, kind: input, shape index: {}]
  %s2 = inlined_call_operand.hbm [shape: f32[2,8,2,16], index: 2, kind: output, shape index: {}]
  %s3 = sld [smem:[#allocation0]]
  $region53: #{tpu_custom_call.1} parent=0
    _
  %s5 = ssub.s32 1, %s3
  %s6 = scalar_select 0, %s5, %s3
  $region1: #{tpu_custom_call.1} parent=0
    #allocation4 [shape = 'u8[16384]{0}', space=vmem, size = 0x4000, scoped, tag = 'input window, operand 0']
    #allocation5 [shape = 's32[2]{0}', space=sflag, size = 0x8, scoped, tag = 'scoped memory for tpu_custom_call.1']
    #allocation6 [shape = 's32[2]{0}', space=sflag, size = 0x8, scoped, tag = 'scoped memory for tpu_custom_call.1']
    #allocation7 [shape = 'u8[16384]{0}', space=vmem, size = 0x4000, scoped, tag = 'input window, operand 1']
    #allocation8 [shape = 's32[2]{0}', space=sflag, size = 0x8, scoped, tag = 'scoped memory for tpu_custom_call.1']
    #allocation9 [shape = 'u8[16384]{0}', space=vmem, size = 0x4000, scoped, tag = 'output window, operand 0']
    %7 = vsyncpa [#allocation5], 0
    %s8 = scalar_lea.sflag [#allocation5], 1
    %9 = vsyncpa %s8, 0
    %10 = vsyncpa [#allocation8], 0
    %s11 = scalar_lea.sflag [#allocation8], 1
    %12 = vsyncpa %s11, 0
    %13 = vsyncpa [#allocation6], 0
    %s14 = scalar_lea.sflag [#allocation6], 1
    %15 = vsyncpa %s14, 0
    loop: start=0, step=1, limit=4
    $region2: #{tpu_custom_call.1} parent=1 // loop_pre_header
      _
    $region3: #{tpu_custom_call.1} parent=1 // loop_header
      %s17 = sphi 0, %s21
      %p18 = scmp.ge.s32.totalorder %s17, 4
      %s24 = sphi 0, %s36
      %s25 = sphi 0, %s32
      %s26 = sphi 0, %s24
      %s27 = sphi 0, %s25
      %s28 = sphi 0, %s26
      %s29 = sphi 0, %s27
      %s51 = sphi 0, %s53
      %s54 = sphi 0, %s51
      %s55 = sphi 0, %s54
      %s71 = sphi 0, %s55
      %s77 = sphi 0, %s79
      %s80 = sphi 0, %s77
      %s81 = sphi 0, %s80
      %s97 = sphi 0, %s81
      %s115 = sphi 0, %s117
      %s118 = sphi 0, %s115
      %s119 = sphi 0, %s118
      %s135 = sphi 0, %s119
    $region4: #{tpu_custom_call.1} parent=1 // loop_header_branch
      %20 = sbr.rel (%p18) target = $region8
    $region5: #{tpu_custom_call.1} parent=1 // loop_body
      %s22 = ssub.s32 %s17, 1
      %s23 = ssub.s32 %s17, 2
      %s30 = sadd.s32 1, %s25
      %p31 = scmp.ge.s32.totalorder %s30, 1
      %s32 = scalar_select %p31, 0, %s30
      %s33 = sadd.s32 1, %s24
      %s34 = scalar_select %p31, %s33, %s24
      %p35 = scmp.ge.s32.totalorder %s34, 2
      %s36 = scalar_select %p35, 0, %s34
      %s37 = ssub.s32 0, %s25
      %s38 = smul.u32 %s24, %s37
      %s39 = ssub.s32 1, %s24
      %s40 = smul.u32 %s39, %s25
      %s41 = sadd.s32 %s38, %s40
      %s42 = ssub.s32 0, %s32
      %s43 = smul.u32 %s36, %s42
      %s44 = ssub.s32 1, %s36
      %s45 = smul.u32 %s44, %s32
      %s46 = sadd.s32 %s43, %s45
      %s47 = ssub.s32 %s24, %s36
      %s48 = ssub.s32 %s41, %s46
      %s49 = sor.u32 %s47, %s48
      %p50 = scmp.eq.s32.totalorder %s49, 0
      %s52 = sadd.s32 %s51, 1
      %s53 = scalar_select %p50, %s51, %s52
      %p56 = pneg %p50
      %p57 = scmp.eq.s32.totalorder %s17, 1
      %p58 = por %p56, %p57
      %p59 = scmp.ne.s32.totalorder %s51, %s54
      %p60 = scmp.eq.s32.totalorder %s17, 0
      %p61 = por %p59, %p60
      %p62 = scmp.ne.s32.totalorder %s51, %s54
      %p63 = scmp.eq.s32.totalorder %s22, 1
      %p64 = por %p62, %p63
      %p65 = scmp.ne.s32.totalorder %s54, %s55
      %p66 = scmp.eq.s32.totalorder %s22, 0
      %p67 = por %p65, %p66
      %p68 = scmp.ne.s32.totalorder %s54, %s55
      %p69 = scmp.eq.s32.totalorder %s23, 1
      %p70 = por %p68, %p69
      %p72 = scmp.ne.s32.totalorder %s55, %s71
      %p73 = scmp.eq.s32.totalorder %s23, 0
      %p74 = por %p72, %p73
      %s75 = ssub.s32 %s24, %s36
      %p76 = scmp.eq.s32.totalorder %s75, 0
      %s78 = sadd.s32 %s77, 1
      %s79 = scalar_select %p76, %s77, %s78
      %p82 = pneg %p76
      %p83 = scmp.eq.s32.totalorder %s17, 1
      %p84 = por %p82, %p83
      %p85 = scmp.ne.s32.totalorder %s77, %s80
      %p86 = scmp.eq.s32.totalorder %s17, 0
      %p87 = por %p85, %p86
      %p88 = scmp.ne.s32.totalorder %s77, %s80
      %p89 = scmp.eq.s32.totalorder %s22, 1
      %p90 = por %p88, %p89
      %p91 = scmp.ne.s32.totalorder %s80, %s81
      %p92 = scmp.eq.s32.totalorder %s22, 0
      %p93 = por %p91, %p92
      %p94 = scmp.ne.s32.totalorder %s80, %s81
      %p95 = scmp.eq.s32.totalorder %s23, 1
      %p96 = por %p94, %p95
      %p98 = scmp.ne.s32.totalorder %s81, %s97
      %p99 = scmp.eq.s32.totalorder %s23, 0
      %p100 = por %p98, %p99
      %s101 = ssub.s32 0, %s25
      %s102 = smul.u32 %s24, %s101
      %s103 = ssub.s32 1, %s24
      %s104 = smul.u32 %s103, %s25
      %s105 = sadd.s32 %s102, %s104
      %s106 = ssub.s32 0, %s32
      %s107 = smul.u32 %s36, %s106
      %s108 = ssub.s32 1, %s36
      %s109 = smul.u32 %s108, %s32
      %s110 = sadd.s32 %s107, %s109
      %s111 = ssub.s32 %s24, %s36
      %s112 = ssub.s32 %s105, %s110
      %s113 = sor.u32 %s111, %s112
      %p114 = scmp.eq.s32.totalorder %s113, 0
      %s116 = sadd.s32 %s115, 1
      %s117 = scalar_select %p114, %s115, %s116
      %p120 = pneg %p114
      %p121 = scmp.eq.s32.totalorder %s17, 1
      %p122 = por %p120, %p121
      %p123 = scmp.ne.s32.totalorder %s115, %s118
      %p124 = scmp.eq.s32.totalorder %s17, 0
      %p125 = por %p123, %p124
      %p126 = scmp.ne.s32.totalorder %s115, %s118
      %p127 = scmp.eq.s32.totalorder %s22, 1
      %p128 = por %p126, %p127
      %p129 = scmp.ne.s32.totalorder %s118, %s119
      %p130 = scmp.eq.s32.totalorder %s22, 0
      %p131 = por %p129, %p130
      %p132 = scmp.ne.s32.totalorder %s118, %s119
      %p133 = scmp.eq.s32.totalorder %s23, 1
      %p134 = por %p132, %p133
      %p136 = scmp.ne.s32.totalorder %s119, %s135
      %p137 = scmp.eq.s32.totalorder %s23, 0
      %p138 = por %p136, %p137
      %p139 = scmp.le.s32.totalorder 1, %s17
      %p140 = scmp.lt.s32.totalorder %s17, 3
      %p141 = pnand %p139, %p140
      %p142 = pneg %p141
      // Predicated region
      $region9: #{tpu_custom_call.1} parent=5 // pred_check
        _
      $region10: #{tpu_custom_call.1} parent=5 // pred_check_branch
        %144 = sbr.rel (%p141) target = $region12
      $region11: #{tpu_custom_call.1} parent=5 // pred_region
        %s145 = ssub.s32 %s17, 1
      $region12: #{tpu_custom_call.1} parent=5 // pred_fallthru
        _
      %p146 = scmp.lt.s32.totalorder %s17, 2
      // Predicated region
      $region13: #{tpu_custom_call.1} parent=5 // pred_check
        %p147 = pneg %p146
      $region14: #{tpu_custom_call.1} parent=5 // pred_check_branch
        %149 = sbr.rel (%p147) target = $region16
      $region15: #{tpu_custom_call.1} parent=5 // pred_region
        // Predicated region
        $region17: #{tpu_custom_call.1} parent=15 // pred_check
          %p150 = pneg %p61
        $region18: #{tpu_custom_call.1} parent=15 // pred_check_branch
          %152 = sbr.rel (%p150) target = $region20
        $region19: #{tpu_custom_call.1} parent=15 // pred_region
          %s153 = sand.u32 %s51, 1
          %s154 = scalar_lea.sflag [#allocation5], %s153
          %s155 = sand.u32 %s51, 1
          %s156 = smul.addr %s155, 16
          %s157 = scalar_lea.vmem [#allocation4], %s156
          %s158 = ssub.s32 0, %s25
          %s159 = smul.u32 %s24, %s158
          %s160 = ssub.s32 1, %s24
          %s161 = smul.u32 %s160, %s25
          %s162 = sadd.s32 %s159, %s161
          %s163 = smul.u32 8, %s162
          %s165 = ssub.s32 256, 256
          %166 = vsyncadd %s154, %s165
          %s167 = smul.addr %s24, 8
          %s168 = sadd.s32 %s163, %s167
          %s169 = smul.addr %s168, 32
          %s170 = scalar_lea.hbm %s0, %s169
          %s171 = sshll.u32 %s157, 4
          %s172 = int_to_ptr.vmem [resolvable:$true] %s171
          %177 = dma.hbm_to_vmem [thread:$0]  %s170, 256, %s172, %s154, 32, 32, 2
        $region20: #{tpu_custom_call.1} parent=15 // pred_fallthru
          _
        // Predicated region
        $region21: #{tpu_custom_call.1} parent=15 // pred_check
          %p178 = pneg %p87
        $region22: #{tpu_custom_call.1} parent=15 // pred_check_branch
          %180 = sbr.rel (%p178) target = $region24
        $region23: #{tpu_custom_call.1} parent=15 // pred_region
          %s181 = sand.u32 %s77, 1
          %s182 = scalar_lea.sflag [#allocation8], %s181
          %s183 = sand.u32 %s77, 1
          %s184 = smul.addr %s183, 16
          %s185 = scalar_lea.vmem [#allocation7], %s184
          %s187 = ssub.s32 256, 256
          %188 = vsyncadd %s182, %s187
          %s189 = smul.addr %s24, 2
          %s190 = smul.addr %s189, 128
          %s191 = scalar_lea.hbm %s1, %s190
          %s192 = sshll.u32 %s185, 4
          %s193 = int_to_ptr.vmem [resolvable:$true] %s192
          %198 = dma.hbm_to_vmem [thread:$0]  %s191, 256, %s193, %s182, 128, 128, 8
        $region24: #{tpu_custom_call.1} parent=15 // pred_fallthru
          _
      $region16: #{tpu_custom_call.1} parent=5 // pred_fallthru
        _
      %p199 = scmp.le.s32.totalorder 1, %s17
      %p200 = scmp.lt.s32.totalorder %s17, 3
      %p201 = pnand %p199, %p200
      %p202 = pneg %p201
      // Predicated region
      $region25: #{tpu_custom_call.1} parent=5 // pred_check
        _
      $region26: #{tpu_custom_call.1} parent=5 // pred_check_branch
        %204 = sbr.rel (%p201) target = $region28
      $region27: #{tpu_custom_call.1} parent=5 // pred_region
        %s205 = ssub.s32 %s17, 1
        %s206 = sand.u32 %s54, 1
        %s207 = scalar_lea.sflag [#allocation5], %s206
        %s208 = sand.u32 %s54, 1
        %s209 = smul.addr %s208, 16
        %s210 = scalar_lea.vmem [#allocation4], %s209
        // Predicated region
        $region29: #{tpu_custom_call.1} parent=27 // pred_check
          %p211 = pneg %p67
        $region30: #{tpu_custom_call.1} parent=27 // pred_check_branch
          %213 = sbr.rel (%p211) target = $region32
        $region31: #{tpu_custom_call.1} parent=27 // pred_region
          %214 = dma.done %s207, 256
        $region32: #{tpu_custom_call.1} parent=27 // pred_fallthru
          _
        %s215 = sand.u32 %s80, 1
        %s216 = scalar_lea.sflag [#allocation8], %s215
        %s217 = sand.u32 %s80, 1
        %s218 = smul.addr %s217, 16
        %s219 = scalar_lea.vmem [#allocation7], %s218
        // Predicated region
        $region33: #{tpu_custom_call.1} parent=27 // pred_check
          %p220 = pneg %p93
        $region34: #{tpu_custom_call.1} parent=27 // pred_check_branch
          %222 = sbr.rel (%p220) target = $region36
        $region35: #{tpu_custom_call.1} parent=27 // pred_region
          %223 = dma.done %s216, 256
        $region36: #{tpu_custom_call.1} parent=27 // pred_fallthru
          _
        %s224 = sand.u32 %s54, 1
        %s225 = scalar_lea.sflag [#allocation5], %s224
        %s226 = sand.u32 %s54, 1
        %s227 = smul.addr %s226, 16
        %s228 = scalar_lea.vmem [#allocation4], %s227
        %p229 = pneg %p67
        %p230 = pneg %p64
        %s231 = sand.u32 %s80, 1
        %s232 = scalar_lea.sflag [#allocation8], %s231
        %s233 = sand.u32 %s80, 1
        %s234 = smul.addr %s233, 16
        %s235 = scalar_lea.vmem [#allocation7], %s234
        %p236 = pneg %p93
        %p237 = pneg %p90
        %p238 = pneg %p131
        %p239 = pneg %p128
        %s240 = sand.u32 %s118, 1
        %s241 = scalar_lea.sflag [#allocation6], %s240
        %s242 = sand.u32 %s118, 1
        %s243 = smul.addr %s242, 16
        %s244 = scalar_lea.vmem [#allocation9], %s243
        %s245 = ssub.s32 0, %s27
        %s246 = smul.u32 %s26, %s245
        %s247 = ssub.s32 1, %s26
        %s248 = smul.u32 %s247, %s27
        %s249 = sadd.s32 %s246, %s248
        %s250 = smul.u32 8, %s249
        %s251 = ssub.s32 0, %s27
        %s252 = smul.u32 %s26, %s251
        %s253 = ssub.s32 1, %s26
        %s254 = smul.u32 %s253, %s27
        %s255 = sadd.s32 %s252, %s254
        %s256 = smul.u32 8, %s255
        %p257 = scmp.eq.s32.totalorder %s27, 0
        // Predicated region
        $region37: #{tpu_custom_call.1} parent=27 // pred_check
          %p258 = pneg %p257
        $region38: #{tpu_custom_call.1} parent=27 // pred_check_branch
          %260 = sbr.rel (%p258) target = $region40
        $region39: #{tpu_custom_call.1} parent=27 // pred_region
          %vm261 = vcmask 123904
          %262 = vst.msk [vmem:[#allocation2] sm:$0x3] %vm261, 0.0
          %263 = vst.msk [vmem:[#allocation3] sm:$0x3] %vm261, 0.0
        $region40: #{tpu_custom_call.1} parent=27 // pred_fallthru
          _
        %v264 = vld [vmem:[%s219] sm:$0xff]
        %v265 = vld [vmem:[%s219 + $0x8] sm:$0xff]
        %v266 = vld [vmem:[#allocation2] sm:$0x3]
        %v267 = vld [vmem:[#allocation3] sm:$0x3]
        %s268 = smul.u32 %s26, 7
        %s269 = smul.u32 %s268, 2
        %s270 = scalar_lea.vmem %s210, %s269 [#allocation4]
        %v271 = vld [vmem:[%s270] sm:$0x3]
        %vm272 = vcmask 130048
        %v274 = vsel %vm272, %v266, 0
        %276 = vmatprep.subr.mxu0 0.0
        %277 = vmatpush1.msra.mxu0 %v264
        %278 = vmatprep.subr.mxu0 0.0
        %279 = vmatpush1.msra.mxu0 %v265
        %280 = vmatprep.subr.mxu0 0.0
        %281 = vmatpush1.msra.mxu0 0.0
        %282 = vmatprep.subr.mxu0 0.0
        %283 = vmatpush1.msra.mxu0 0.0
        %284 = vmatprep.subr.mxu0 0.0
        %285 = vmatpush1.msra.mxu0 0.0
        %286 = vmatprep.subr.mxu0 0.0
        %287 = vmatpush1.msra.mxu0 0.0
        %288 = vmatprep.subr.mxu0 0.0
        %289 = vmatpush1.msra.mxu0 0.0
        %290 = vmatprep.subr.mxu0 0.0
        %291 = vmatpush1.msra.mxu0 0.0
        %292 = vmatprep.subr.mxu0 0.0
        %293 = vmatpush1.msra.mxu0 0.0
        %294 = vmatprep.subr.mxu0 0.0
        %295 = vmatpush1.msra.mxu0 0.0
        %296 = vmatprep.subr.mxu0 0.0
        %297 = vmatpush1.msra.mxu0 0.0
        %298 = vmatprep.subr.mxu0 0.0
        %299 = vmatpush1.msra.mxu0 0.0
        %300 = vmatprep.subr.mxu0 0.0
        %301 = vmatpush1.msra.mxu0 0.0
        %302 = vmatprep.subr.mxu0 0.0
        %303 = vmatpush1.msra.mxu0 0.0
        %304 = vmatprep.subr.mxu0 0.0
        %305 = vmatpush1.msra.mxu0 0.0
        %306 = vmatprep.subr.mxu0 0.0
        %307 = vmatpush1.msra.mxu0 0.0
        %308 = vmatprep.subr.mxu0 0.0
        %309 = vmatpush1.msra.mxu0 0.0
        %310 = vmatprep.subr.mxu0 0.0
        %311 = vmatpush1.msra.mxu0 0.0
        %312 = vmatprep.subr.mxu0 0.0
        %313 = vmatpush1.msra.mxu0 0.0
        %314 = vmatprep.subr.mxu0 0.0
        %315 = vmatpush1.msra.mxu0 0.0
        %316 = vmatprep.subr.mxu0 0.0
        %317 = vmatpush1.msra.mxu0 0.0
        %318 = vmatprep.subr.mxu0 0.0
        %319 = vmatpush1.msra.mxu0 0.0
        %320 = vmatprep.subr.mxu0 0.0
        %321 = vmatpush1.msra.mxu0 0.0
        %322 = vmatprep.subr.mxu0 0.0
        %323 = vmatpush1.msra.mxu0 0.0
        %324 = vmatprep.subr.mxu0 0.0
        %325 = vmatpush1.msra.mxu0 0.0
        %326 = vmatprep.subr.mxu0 0.0
        %327 = vmatpush1.msra.mxu0 0.0
        %328 = vmatprep.subr.mxu0 0.0
        %329 = vmatpush1.msra.mxu0 0.0
        %330 = vmatprep.subr.mxu0 0.0
        %331 = vmatpush1.msra.mxu0 0.0
        %332 = vmatprep.subr.mxu0 0.0
        %333 = vmatpush1.msra.mxu0 0.0
        %334 = vmatprep.subr.mxu0 0.0
        %335 = vmatpush1.msra.mxu0 0.0
        %336 = vmatprep.subr.mxu0 0.0
        %337 = vmatpush1.msra.mxu0 0.0
        %338 = vmatprep.subr.mxu0 0.0
        %339 = vmatpush1.msra.mxu0 0.0
        %340 = vmatprep.mubr.f32.mxu0 0.0
        %341 = vmatmul.mubr.f32.gmra.mrb[0].mxu0 %v274
        %v342 = vpop.f32.mrb[0].mxu0
        %v343 = vadd.f32 0.0, %v342
        %v344 = vpop.f32.mrb[0].mxu0
        %345 = vdwg.mxu0
        %v346 = vadd.f32 %v271, %v343
        %v347 = vmul.f32 %v346, 0.5
        %v348 = vtanh.pop %v347
        %v349 = vadd.f32 %v348, 1.0
        %v350 = vmul.f32 %v349, 0.5
        %v351 = vtanh.pop %v346
        %353 = vrot.lane.b32.xlu0 %v267, 16
        %v354 = vpop.permute.xlu0 %353
        %v356 = vmul.f32 %v350, %v354
        %358 = vrot.lane.b32.xlu0 %v351, 96
        %v359 = vpop.permute.xlu0 %358
        %v361 = vmul.f32 %v350, %v359
        %363 = vrot.lane.b32.xlu0 %v361, 16
        %v364 = vpop.permute.xlu0 %363
        %v366 = vadd.f32 %v356, %v364
        %v367 = vtanh.pop %v366
        %369 = vrot.lane.b32.xlu0 %v367, 32
        %v370 = vpop.permute.xlu0 %369
        %v372 = vmul.f32 %v350, %v370
        %374 = vrot.lane.b32.xlu0 %v372, 80
        %v375 = vpop.permute.xlu0 %374
        %s377 = scalar_lea.vmem %s244, %s269 [#allocation9]
        %vm378 = vcmask 123904
        %379 = vst.msk [vmem:[%s377] sm:$0x3] %vm378, %v375
        %s380 = smul.u32 %s26, 6
        %s381 = ssub.s32 1, %s26
        %s382 = sadd.s32 %s380, %s381
        %s383 = smul.u32 %s382, 2
        %s384 = scalar_lea.vmem %s210, %s383 [#allocation4]
        %v385 = vld [vmem:[%s384] sm:$0x3]
        %v386 = vsel %vm272, %v375, 0
        %388 = vmatprep.subr.mxu0 0.0
        %389 = vmatpush1.msra.mxu0 %v264
        %390 = vmatprep.subr.mxu0 0.0
        %391 = vmatpush1.msra.mxu0 %v265
        %392 = vmatprep.subr.mxu0 0.0
        %393 = vmatpush1.msra.mxu0 0.0
        %394 = vmatprep.subr.mxu0 0.0
        %395 = vmatpush1.msra.mxu0 0.0
        %396 = vmatprep.subr.mxu0 0.0
        %397 = vmatpush1.msra.mxu0 0.0
        %398 = vmatprep.subr.mxu0 0.0
        %399 = vmatpush1.msra.mxu0 0.0
        %400 = vmatprep.subr.mxu0 0.0
        %401 = vmatpush1.msra.mxu0 0.0
        %402 = vmatprep.subr.mxu0 0.0
        %403 = vmatpush1.msra.mxu0 0.0
        %404 = vmatprep.subr.mxu0 0.0
        %405 = vmatpush1.msra.mxu0 0.0
        %406 = vmatprep.subr.mxu0 0.0
        %407 = vmatpush1.msra.mxu0 0.0
        %408 = vmatprep.subr.mxu0 0.0
        %409 = vmatpush1.msra.mxu0 0.0
        %410 = vmatprep.subr.mxu0 0.0
        %411 = vmatpush1.msra.mxu0 0.0
        %412 = vmatprep.subr.mxu0 0.0
        %413 = vmatpush1.msra.mxu0 0.0
        %414 = vmatprep.subr.mxu0 0.0
        %415 = vmatpush1.msra.mxu0 0.0
        %416 = vmatprep.subr.mxu0 0.0
        %417 = vmatpush1.msra.mxu0 0.0
        %418 = vmatprep.subr.mxu0 0.0
        %419 = vmatpush1.msra.mxu0 0.0
        %420 = vmatprep.subr.mxu0 0.0
        %421 = vmatpush1.msra.mxu0 0.0
        %422 = vmatprep.subr.mxu0 0.0
        %423 = vmatpush1.msra.mxu0 0.0
        %424 = vmatprep.subr.mxu0 0.0
        %425 = vmatpush1.msra.mxu0 0.0
        %426 = vmatprep.subr.mxu0 0.0
        %427 = vmatpush1.msra.mxu0 0.0
        %428 = vmatprep.subr.mxu0 0.0
        %429 = vmatpush1.msra.mxu0 0.0
        %430 = vmatprep.subr.mxu0 0.0
        %431 = vmatpush1.msra.mxu0 0.0
        %432 = vmatprep.subr.mxu0 0.0
        %433 = vmatpush1.msra.mxu0 0.0
        %434 = vmatprep.subr.mxu0 0.0
        %435 = vmatpush1.msra.mxu0 0.0
        %436 = vmatprep.subr.mxu0 0.0
        %437 = vmatpush1.msra.mxu0 0.0
        %438 = vmatprep.subr.mxu0 0.0
        %439 = vmatpush1.msra.mxu0 0.0
        %440 = vmatprep.subr.mxu0 0.0
        %441 = vmatpush1.msra.mxu0 0.0
        %442 = vmatprep.subr.mxu0 0.0
        %443 = vmatpush1.msra.mxu0 0.0
        %444 = vmatprep.subr.mxu0 0.0
        %445 = vmatpush1.msra.mxu0 0.0
        %446 = vmatprep.subr.mxu0 0.0
        %447 = vmatpush1.msra.mxu0 0.0
        %448 = vmatprep.subr.mxu0 0.0
        %449 = vmatpush1.msra.mxu0 0.0
        %450 = vmatprep.subr.mxu0 0.0
        %451 = vmatpush1.msra.mxu0 0.0
        %452 = vmatprep.mubr.f32.mxu0 0.0
        %453 = vmatmul.mubr.f32.gmra.mrb[0].mxu0 %v386
        %v454 = vpop.f32.mrb[0].mxu0
        %v455 = vadd.f32 0.0, %v454
        %v456 = vpop.f32.mrb[0].mxu0
        %457 = vdwg.mxu0
        %v458 = vadd.f32 %v385, %v455
        %v459 = vmul.f32 %v458, 0.5
        %v460 = vtanh.pop %v459
        %v461 = vadd.f32 %v460, 1.0
        %v462 = vmul.f32 %v461, 0.5
        %v463 = vtanh.pop %v458
        %v464 = vmul.f32 %v462, %v366
        %466 = vrot.lane.b32.xlu0 %v463, 96
        %v467 = vpop.permute.xlu0 %466
        %v469 = vmul.f32 %v462, %v467
        %471 = vrot.lane.b32.xlu0 %v469, 16
        %v472 = vpop.permute.xlu0 %471
        %v474 = vadd.f32 %v464, %v472
        %v475 = vtanh.pop %v474
        %477 = vrot.lane.b32.xlu0 %v475, 32
        %v478 = vpop.permute.xlu0 %477
        %v480 = vmul.f32 %v462, %v478
        %482 = vrot.lane.b32.xlu0 %v480, 80
        %v483 = vpop.permute.xlu0 %482
        %s485 = scalar_lea.vmem %s244, %s383 [#allocation9]
        %486 = vst.msk [vmem:[%s485] sm:$0x3] %vm378, %v483
        %s487 = smul.u32 %s26, 5
        %s488 = smul.u32 %s381, 2
        %s489 = sadd.s32 %s487, %s488
        %s490 = smul.u32 %s489, 2
        %s491 = scalar_lea.vmem %s210, %s490 [#allocation4]
        %v492 = vld [vmem:[%s491] sm:$0x3]
        %v493 = vsel %vm272, %v483, 0
        %495 = vmatprep.subr.mxu0 0.0
        %496 = vmatpush1.msra.mxu0 %v264
        %497 = vmatprep.subr.mxu0 0.0
        %498 = vmatpush1.msra.mxu0 %v265
        %499 = vmatprep.subr.mxu0 0.0
        %500 = vmatpush1.msra.mxu0 0.0
        %501 = vmatprep.subr.mxu0 0.0
        %502 = vmatpush1.msra.mxu0 0.0
        %503 = vmatprep.subr.mxu0 0.0
        %504 = vmatpush1.msra.mxu0 0.0
        %505 = vmatprep.subr.mxu0 0.0
        %506 = vmatpush1.msra.mxu0 0.0
        %507 = vmatprep.subr.mxu0 0.0
        %508 = vmatpush1.msra.mxu0 0.0
        %509 = vmatprep.subr.mxu0 0.0
        %510 = vmatpush1.msra.mxu0 0.0
        %511 = vmatprep.subr.mxu0 0.0
        %512 = vmatpush1.msra.mxu0 0.0
        %513 = vmatprep.subr.mxu0 0.0
        %514 = vmatpush1.msra.mxu0 0.0
        %515 = vmatprep.subr.mxu0 0.0
        %516 = vmatpush1.msra.mxu0 0.0
        %517 = vmatprep.subr.mxu0 0.0
        %518 = vmatpush1.msra.mxu0 0.0
        %519 = vmatprep.subr.mxu0 0.0
        %520 = vmatpush1.msra.mxu0 0.0
        %521 = vmatprep.subr.mxu0 0.0
        %522 = vmatpush1.msra.mxu0 0.0
        %523 = vmatprep.subr.mxu0 0.0
        %524 = vmatpush1.msra.mxu0 0.0
        %525 = vmatprep.subr.mxu0 0.0
        %526 = vmatpush1.msra.mxu0 0.0
        %527 = vmatprep.subr.mxu0 0.0
        %528 = vmatpush1.msra.mxu0 0.0
        %529 = vmatprep.subr.mxu0 0.0
        %530 = vmatpush1.msra.mxu0 0.0
        %531 = vmatprep.subr.mxu0 0.0
        %532 = vmatpush1.msra.mxu0 0.0
        %533 = vmatprep.subr.mxu0 0.0
        %534 = vmatpush1.msra.mxu0 0.0
        %535 = vmatprep.subr.mxu0 0.0
        %536 = vmatpush1.msra.mxu0 0.0
        %537 = vmatprep.subr.mxu0 0.0
        %538 = vmatpush1.msra.mxu0 0.0
        %539 = vmatprep.subr.mxu0 0.0
        %540 = vmatpush1.msra.mxu0 0.0
        %541 = vmatprep.subr.mxu0 0.0
        %542 = vmatpush1.msra.mxu0 0.0
        %543 = vmatprep.subr.mxu0 0.0
        %544 = vmatpush1.msra.mxu0 0.0
        %545 = vmatprep.subr.mxu0 0.0
        %546 = vmatpush1.msra.mxu0 0.0
        %547 = vmatprep.subr.mxu0 0.0
        %548 = vmatpush1.msra.mxu0 0.0
        %549 = vmatprep.subr.mxu0 0.0
        %550 = vmatpush1.msra.mxu0 0.0
        %551 = vmatprep.subr.mxu0 0.0
        %552 = vmatpush1.msra.mxu0 0.0
        %553 = vmatprep.subr.mxu0 0.0
        %554 = vmatpush1.msra.mxu0 0.0
        %555 = vmatprep.subr.mxu0 0.0
        %556 = vmatpush1.msra.mxu0 0.0
        %557 = vmatprep.subr.mxu0 0.0
        %558 = vmatpush1.msra.mxu0 0.0
        %559 = vmatprep.mubr.f32.mxu0 0.0
        %560 = vmatmul.mubr.f32.gmra.mrb[0].mxu0 %v493
        %v561 = vpop.f32.mrb[0].mxu0
        %v562 = vadd.f32 0.0, %v561
        %v563 = vpop.f32.mrb[0].mxu0
        %564 = vdwg.mxu0
        %v565 = vadd.f32 %v492, %v562
        %v566 = vmul.f32 %v565, 0.5
        %v567 = vtanh.pop %v566
        %v568 = vadd.f32 %v567, 1.0
        %v569 = vmul.f32 %v568, 0.5
        %v570 = vtanh.pop %v565
        %v571 = vmul.f32 %v569, %v474
        %573 = vrot.lane.b32.xlu0 %v570, 96
        %v574 = vpop.permute.xlu0 %573
        %v576 = vmul.f32 %v569, %v574
        %578 = vrot.lane.b32.xlu0 %v576, 16
        %v579 = vpop.permute.xlu0 %578
        %v581 = vadd.f32 %v571, %v579
        %v582 = vtanh.pop %v581
        %584 = vrot.lane.b32.xlu0 %v582, 32
        %v585 = vpop.permute.xlu0 %584
        %v587 = vmul.f32 %v569, %v585
        %589 = vrot.lane.b32.xlu0 %v587, 80
        %v590 = vpop.permute.xlu0 %589
        %s592 = scalar_lea.vmem %s244, %s490 [#allocation9]
        %593 = vst.msk [vmem:[%s592] sm:$0x3] %vm378, %v590
        %s594 = smul.u32 %s26, 4
        %s595 = smul.u32 %s381, 3
        %s596 = sadd.s32 %s594, %s595
        %s597 = smul.u32 %s596, 2
        %s598 = scalar_lea.vmem %s210, %s597 [#allocation4]
        %v599 = vld [vmem:[%s598] sm:$0x3]
        %v600 = vsel %vm272, %v590, 0
        %602 = vmatprep.subr.mxu0 0.0
        %603 = vmatpush1.msra.mxu0 %v264
        %604 = vmatprep.subr.mxu0 0.0
        %605 = vmatpush1.msra.mxu0 %v265
        %606 = vmatprep.subr.mxu0 0.0
        %607 = vmatpush1.msra.mxu0 0.0
        %608 = vmatprep.subr.mxu0 0.0
        %609 = vmatpush1.msra.mxu0 0.0
        %610 = vmatprep.subr.mxu0 0.0
        %611 = vmatpush1.msra.mxu0 0.0
        %612 = vmatprep.subr.mxu0 0.0
        %613 = vmatpush1.msra.mxu0 0.0
        %614 = vmatprep.subr.mxu0 0.0
        %615 = vmatpush1.msra.mxu0 0.0
        %616 = vmatprep.subr.mxu0 0.0
        %617 = vmatpush1.msra.mxu0 0.0
        %618 = vmatprep.subr.mxu0 0.0
        %619 = vmatpush1.msra.mxu0 0.0
        %620 = vmatprep.subr.mxu0 0.0
        %621 = vmatpush1.msra.mxu0 0.0
        %622 = vmatprep.subr.mxu0 0.0
        %623 = vmatpush1.msra.mxu0 0.0
        %624 = vmatprep.subr.mxu0 0.0
        %625 = vmatpush1.msra.mxu0 0.0
        %626 = vmatprep.subr.mxu0 0.0
        %627 = vmatpush1.msra.mxu0 0.0
        %628 = vmatprep.subr.mxu0 0.0
        %629 = vmatpush1.msra.mxu0 0.0
        %630 = vmatprep.subr.mxu0 0.0
        %631 = vmatpush1.msra.mxu0 0.0
        %632 = vmatprep.subr.mxu0 0.0
        %633 = vmatpush1.msra.mxu0 0.0
        %634 = vmatprep.subr.mxu0 0.0
        %635 = vmatpush1.msra.mxu0 0.0
        %636 = vmatprep.subr.mxu0 0.0
        %637 = vmatpush1.msra.mxu0 0.0
        %638 = vmatprep.subr.mxu0 0.0
        %639 = vmatpush1.msra.mxu0 0.0
        %640 = vmatprep.subr.mxu0 0.0
        %641 = vmatpush1.msra.mxu0 0.0
        %642 = vmatprep.subr.mxu0 0.0
        %643 = vmatpush1.msra.mxu0 0.0
        %644 = vmatprep.subr.mxu0 0.0
        %645 = vmatpush1.msra.mxu0 0.0
        %646 = vmatprep.subr.mxu0 0.0
        %647 = vmatpush1.msra.mxu0 0.0
        %648 = vmatprep.subr.mxu0 0.0
        %649 = vmatpush1.msra.mxu0 0.0
        %650 = vmatprep.subr.mxu0 0.0
        %651 = vmatpush1.msra.mxu0 0.0
        %652 = vmatprep.subr.mxu0 0.0
        %653 = vmatpush1.msra.mxu0 0.0
        %654 = vmatprep.subr.mxu0 0.0
        %655 = vmatpush1.msra.mxu0 0.0
        %656 = vmatprep.subr.mxu0 0.0
        %657 = vmatpush1.msra.mxu0 0.0
        %658 = vmatprep.subr.mxu0 0.0
        %659 = vmatpush1.msra.mxu0 0.0
        %660 = vmatprep.subr.mxu0 0.0
        %661 = vmatpush1.msra.mxu0 0.0
        %662 = vmatprep.subr.mxu0 0.0
        %663 = vmatpush1.msra.mxu0 0.0
        %664 = vmatprep.subr.mxu0 0.0
        %665 = vmatpush1.msra.mxu0 0.0
        %666 = vmatprep.mubr.f32.mxu0 0.0
        %667 = vmatmul.mubr.f32.gmra.mrb[0].mxu0 %v600
        %v668 = vpop.f32.mrb[0].mxu0
        %v669 = vadd.f32 0.0, %v668
        %v670 = vpop.f32.mrb[0].mxu0
        %671 = vdwg.mxu0
        %v672 = vadd.f32 %v599, %v669
        %v673 = vmul.f32 %v672, 0.5
        %v674 = vtanh.pop %v673
        %v675 = vadd.f32 %v674, 1.0
        %v676 = vmul.f32 %v675, 0.5
        %v677 = vtanh.pop %v672
        %v678 = vmul.f32 %v676, %v581
        %680 = vrot.lane.b32.xlu0 %v677, 96
        %v681 = vpop.permute.xlu0 %680
        %v683 = vmul.f32 %v676, %v681
        %685 = vrot.lane.b32.xlu0 %v683, 16
        %v686 = vpop.permute.xlu0 %685
        %v688 = vadd.f32 %v678, %v686
        %v689 = vtanh.pop %v688
        %691 = vrot.lane.b32.xlu0 %v689, 32
        %v692 = vpop.permute.xlu0 %691
        %v694 = vmul.f32 %v676, %v692
        %696 = vrot.lane.b32.xlu0 %v694, 80
        %v697 = vpop.permute.xlu0 %696
        %s699 = scalar_lea.vmem %s244, %s597 [#allocation9]
        %700 = vst.msk [vmem:[%s699] sm:$0x3] %vm378, %v697
        %s701 = smul.u32 %s26, 3
        %s702 = smul.u32 %s381, 4
        %s703 = sadd.s32 %s701, %s702
        %s704 = smul.u32 %s703, 2
        %s705 = scalar_lea.vmem %s210, %s704 [#allocation4]
        %v706 = vld [vmem:[%s705] sm:$0x3]
        %v707 = vsel %vm272, %v697, 0
        %709 = vmatprep.subr.mxu0 0.0
        %710 = vmatpush1.msra.mxu0 %v264
        %711 = vmatprep.subr.mxu0 0.0
        %712 = vmatpush1.msra.mxu0 %v265
        %713 = vmatprep.subr.mxu0 0.0
        %714 = vmatpush1.msra.mxu0 0.0
        %715 = vmatprep.subr.mxu0 0.0
        %716 = vmatpush1.msra.mxu0 0.0
        %717 = vmatprep.subr.mxu0 0.0
        %718 = vmatpush1.msra.mxu0 0.0
        %719 = vmatprep.subr.mxu0 0.0
        %720 = vmatpush1.msra.mxu0 0.0
        %721 = vmatprep.subr.mxu0 0.0
        %722 = vmatpush1.msra.mxu0 0.0
        %723 = vmatprep.subr.mxu0 0.0
        %724 = vmatpush1.msra.mxu0 0.0
        %725 = vmatprep.subr.mxu0 0.0
        %726 = vmatpush1.msra.mxu0 0.0
        %727 = vmatprep.subr.mxu0 0.0
        %728 = vmatpush1.msra.mxu0 0.0
        %729 = vmatprep.subr.mxu0 0.0
        %730 = vmatpush1.msra.mxu0 0.0
        %731 = vmatprep.subr.mxu0 0.0
        %732 = vmatpush1.msra.mxu0 0.0
        %733 = vmatprep.subr.mxu0 0.0
        %734 = vmatpush1.msra.mxu0 0.0
        %735 = vmatprep.subr.mxu0 0.0
        %736 = vmatpush1.msra.mxu0 0.0
        %737 = vmatprep.subr.mxu0 0.0
        %738 = vmatpush1.msra.mxu0 0.0
        %739 = vmatprep.subr.mxu0 0.0
        %740 = vmatpush1.msra.mxu0 0.0
        %741 = vmatprep.subr.mxu0 0.0
        %742 = vmatpush1.msra.mxu0 0.0
        %743 = vmatprep.subr.mxu0 0.0
        %744 = vmatpush1.msra.mxu0 0.0
        %745 = vmatprep.subr.mxu0 0.0
        %746 = vmatpush1.msra.mxu0 0.0
        %747 = vmatprep.subr.mxu0 0.0
        %748 = vmatpush1.msra.mxu0 0.0
        %749 = vmatprep.subr.mxu0 0.0
        %750 = vmatpush1.msra.mxu0 0.0
        %751 = vmatprep.subr.mxu0 0.0
        %752 = vmatpush1.msra.mxu0 0.0
        %753 = vmatprep.subr.mxu0 0.0
        %754 = vmatpush1.msra.mxu0 0.0
        %755 = vmatprep.subr.mxu0 0.0
        %756 = vmatpush1.msra.mxu0 0.0
        %757 = vmatprep.subr.mxu0 0.0
        %758 = vmatpush1.msra.mxu0 0.0
        %759 = vmatprep.subr.mxu0 0.0
        %760 = vmatpush1.msra.mxu0 0.0
        %761 = vmatprep.subr.mxu0 0.0
        %762 = vmatpush1.msra.mxu0 0.0
        %763 = vmatprep.subr.mxu0 0.0
        %764 = vmatpush1.msra.mxu0 0.0
        %765 = vmatprep.subr.mxu0 0.0
        %766 = vmatpush1.msra.mxu0 0.0
        %767 = vmatprep.subr.mxu0 0.0
        %768 = vmatpush1.msra.mxu0 0.0
        %769 = vmatprep.subr.mxu0 0.0
        %770 = vmatpush1.msra.mxu0 0.0
        %771 = vmatprep.subr.mxu0 0.0
        %772 = vmatpush1.msra.mxu0 0.0
        %773 = vmatprep.mubr.f32.mxu0 0.0
        %774 = vmatmul.mubr.f32.gmra.mrb[0].mxu0 %v707
        %v775 = vpop.f32.mrb[0].mxu0
        %v776 = vadd.f32 0.0, %v775
        %v777 = vpop.f32.mrb[0].mxu0
        %778 = vdwg.mxu0
        %v779 = vadd.f32 %v706, %v776
        %v780 = vmul.f32 %v779, 0.5
        %v781 = vtanh.pop %v780
        %v782 = vadd.f32 %v781, 1.0
        %v783 = vmul.f32 %v782, 0.5
        %v784 = vtanh.pop %v779
        %v785 = vmul.f32 %v783, %v688
        %787 = vrot.lane.b32.xlu0 %v784, 96
        %v788 = vpop.permute.xlu0 %787
        %v790 = vmul.f32 %v783, %v788
        %792 = vrot.lane.b32.xlu0 %v790, 16
        %v793 = vpop.permute.xlu0 %792
        %v795 = vadd.f32 %v785, %v793
        %v796 = vtanh.pop %v795
        %798 = vrot.lane.b32.xlu0 %v796, 32
        %v799 = vpop.permute.xlu0 %798
        %v801 = vmul.f32 %v783, %v799
        %803 = vrot.lane.b32.xlu0 %v801, 80
        %v804 = vpop.permute.xlu0 %803
        %s806 = scalar_lea.vmem %s244, %s704 [#allocation9]
        %807 = vst.msk [vmem:[%s806] sm:$0x3] %vm378, %v804
        %s808 = smul.u32 %s26, 2
        %s809 = smul.u32 %s381, 5
        %s810 = sadd.s32 %s808, %s809
        %s811 = smul.u32 %s810, 2
        %s812 = scalar_lea.vmem %s210, %s811 [#allocation4]
        %v813 = vld [vmem:[%s812] sm:$0x3]
        %v814 = vsel %vm272, %v804, 0
        %816 = vmatprep.subr.mxu0 0.0
        %817 = vmatpush1.msra.mxu0 %v264
        %818 = vmatprep.subr.mxu0 0.0
        %819 = vmatpush1.msra.mxu0 %v265
        %820 = vmatprep.subr.mxu0 0.0
        %821 = vmatpush1.msra.mxu0 0.0
        %822 = vmatprep.subr.mxu0 0.0
        %823 = vmatpush1.msra.mxu0 0.0
        %824 = vmatprep.subr.mxu0 0.0
        %825 = vmatpush1.msra.mxu0 0.0
        %826 = vmatprep.subr.mxu0 0.0
        %827 = vmatpush1.msra.mxu0 0.0
        %828 = vmatprep.subr.mxu0 0.0
        %829 = vmatpush1.msra.mxu0 0.0
        %830 = vmatprep.subr.mxu0 0.0
        %831 = vmatpush1.msra.mxu0 0.0
        %832 = vmatprep.subr.mxu0 0.0
        %833 = vmatpush1.msra.mxu0 0.0
        %834 = vmatprep.subr.mxu0 0.0
        %835 = vmatpush1.msra.mxu0 0.0
        %836 = vmatprep.subr.mxu0 0.0
        %837 = vmatpush1.msra.mxu0 0.0
        %838 = vmatprep.subr.mxu0 0.0
        %839 = vmatpush1.msra.mxu0 0.0
        %840 = vmatprep.subr.mxu0 0.0
        %841 = vmatpush1.msra.mxu0 0.0
        %842 = vmatprep.subr.mxu0 0.0
        %843 = vmatpush1.msra.mxu0 0.0
        %844 = vmatprep.subr.mxu0 0.0
        %845 = vmatpush1.msra.mxu0 0.0
        %846 = vmatprep.subr.mxu0 0.0
        %847 = vmatpush1.msra.mxu0 0.0
        %848 = vmatprep.subr.mxu0 0.0
        %849 = vmatpush1.msra.mxu0 0.0
        %850 = vmatprep.subr.mxu0 0.0
        %851 = vmatpush1.msra.mxu0 0.0
        %852 = vmatprep.subr.mxu0 0.0
        %853 = vmatpush1.msra.mxu0 0.0
        %854 = vmatprep.subr.mxu0 0.0
        %855 = vmatpush1.msra.mxu0 0.0
        %856 = vmatprep.subr.mxu0 0.0
        %857 = vmatpush1.msra.mxu0 0.0
        %858 = vmatprep.subr.mxu0 0.0
        %859 = vmatpush1.msra.mxu0 0.0
        %860 = vmatprep.subr.mxu0 0.0
        %861 = vmatpush1.msra.mxu0 0.0
        %862 = vmatprep.subr.mxu0 0.0
        %863 = vmatpush1.msra.mxu0 0.0
        %864 = vmatprep.subr.mxu0 0.0
        %865 = vmatpush1.msra.mxu0 0.0
        %866 = vmatprep.subr.mxu0 0.0
        %867 = vmatpush1.msra.mxu0 0.0
        %868 = vmatprep.subr.mxu0 0.0
        %869 = vmatpush1.msra.mxu0 0.0
        %870 = vmatprep.subr.mxu0 0.0
        %871 = vmatpush1.msra.mxu0 0.0
        %872 = vmatprep.subr.mxu0 0.0
        %873 = vmatpush1.msra.mxu0 0.0
        %874 = vmatprep.subr.mxu0 0.0
        %875 = vmatpush1.msra.mxu0 0.0
        %876 = vmatprep.subr.mxu0 0.0
        %877 = vmatpush1.msra.mxu0 0.0
        %878 = vmatprep.subr.mxu0 0.0
        %879 = vmatpush1.msra.mxu0 0.0
        %880 = vmatprep.mubr.f32.mxu0 0.0
        %881 = vmatmul.mubr.f32.gmra.mrb[0].mxu0 %v814
        %v882 = vpop.f32.mrb[0].mxu0
        %v883 = vadd.f32 0.0, %v882
        %v884 = vpop.f32.mrb[0].mxu0
        %885 = vdwg.mxu0
        %v886 = vadd.f32 %v813, %v883
        %v887 = vmul.f32 %v886, 0.5
        %v888 = vtanh.pop %v887
        %v889 = vadd.f32 %v888, 1.0
        %v890 = vmul.f32 %v889, 0.5
        %v891 = vtanh.pop %v886
        %v892 = vmul.f32 %v890, %v795
        %894 = vrot.lane.b32.xlu0 %v891, 96
        %v895 = vpop.permute.xlu0 %894
        %v897 = vmul.f32 %v890, %v895
        %899 = vrot.lane.b32.xlu0 %v897, 16
        %v900 = vpop.permute.xlu0 %899
        %v902 = vadd.f32 %v892, %v900
        %v903 = vtanh.pop %v902
        %905 = vrot.lane.b32.xlu0 %v903, 32
        %v906 = vpop.permute.xlu0 %905
        %v908 = vmul.f32 %v890, %v906
        %910 = vrot.lane.b32.xlu0 %v908, 80
        %v911 = vpop.permute.xlu0 %910
        %s913 = scalar_lea.vmem %s244, %s811 [#allocation9]
        %914 = vst.msk [vmem:[%s913] sm:$0x3] %vm378, %v911
        %s915 = smul.u32 %s381, 6
        %s916 = sadd.s32 %s26, %s915
        %s917 = smul.u32 %s916, 2
        %s918 = scalar_lea.vmem %s210, %s917 [#allocation4]
        %v919 = vld [vmem:[%s918] sm:$0x3]
        %v920 = vsel %vm272, %v911, 0
        %922 = vmatprep.subr.mxu0 0.0
        %923 = vmatpush1.msra.mxu0 %v264
        %924 = vmatprep.subr.mxu0 0.0
        %925 = vmatpush1.msra.mxu0 %v265
        %926 = vmatprep.subr.mxu0 0.0
        %927 = vmatpush1.msra.mxu0 0.0
        %928 = vmatprep.subr.mxu0 0.0
        %929 = vmatpush1.msra.mxu0 0.0
        %930 = vmatprep.subr.mxu0 0.0
        %931 = vmatpush1.msra.mxu0 0.0
        %932 = vmatprep.subr.mxu0 0.0
        %933 = vmatpush1.msra.mxu0 0.0
        %934 = vmatprep.subr.mxu0 0.0
        %935 = vmatpush1.msra.mxu0 0.0
        %936 = vmatprep.subr.mxu0 0.0
        %937 = vmatpush1.msra.mxu0 0.0
        %938 = vmatprep.subr.mxu0 0.0
        %939 = vmatpush1.msra.mxu0 0.0
        %940 = vmatprep.subr.mxu0 0.0
        %941 = vmatpush1.msra.mxu0 0.0
        %942 = vmatprep.subr.mxu0 0.0
        %943 = vmatpush1.msra.mxu0 0.0
        %944 = vmatprep.subr.mxu0 0.0
        %945 = vmatpush1.msra.mxu0 0.0
        %946 = vmatprep.subr.mxu0 0.0
        %947 = vmatpush1.msra.mxu0 0.0
        %948 = vmatprep.subr.mxu0 0.0
        %949 = vmatpush1.msra.mxu0 0.0
        %950 = vmatprep.subr.mxu0 0.0
        %951 = vmatpush1.msra.mxu0 0.0
        %952 = vmatprep.subr.mxu0 0.0
        %953 = vmatpush1.msra.mxu0 0.0
        %954 = vmatprep.subr.mxu0 0.0
        %955 = vmatpush1.msra.mxu0 0.0
        %956 = vmatprep.subr.mxu0 0.0
        %957 = vmatpush1.msra.mxu0 0.0
        %958 = vmatprep.subr.mxu0 0.0
        %959 = vmatpush1.msra.mxu0 0.0
        %960 = vmatprep.subr.mxu0 0.0
        %961 = vmatpush1.msra.mxu0 0.0
        %962 = vmatprep.subr.mxu0 0.0
        %963 = vmatpush1.msra.mxu0 0.0
        %964 = vmatprep.subr.mxu0 0.0
        %965 = vmatpush1.msra.mxu0 0.0
        %966 = vmatprep.subr.mxu0 0.0
        %967 = vmatpush1.msra.mxu0 0.0
        %968 = vmatprep.subr.mxu0 0.0
        %969 = vmatpush1.msra.mxu0 0.0
        %970 = vmatprep.subr.mxu0 0.0
        %971 = vmatpush1.msra.mxu0 0.0
        %972 = vmatprep.subr.mxu0 0.0
        %973 = vmatpush1.msra.mxu0 0.0
        %974 = vmatprep.subr.mxu0 0.0
        %975 = vmatpush1.msra.mxu0 0.0
        %976 = vmatprep.subr.mxu0 0.0
        %977 = vmatpush1.msra.mxu0 0.0
        %978 = vmatprep.subr.mxu0 0.0
        %979 = vmatpush1.msra.mxu0 0.0
        %980 = vmatprep.subr.mxu0 0.0
        %981 = vmatpush1.msra.mxu0 0.0
        %982 = vmatprep.subr.mxu0 0.0
        %983 = vmatpush1.msra.mxu0 0.0
        %984 = vmatprep.subr.mxu0 0.0
        %985 = vmatpush1.msra.mxu0 0.0
        %986 = vmatprep.mubr.f32.mxu0 0.0
        %987 = vmatmul.mubr.f32.gmra.mrb[0].mxu0 %v920
        %v988 = vpop.f32.mrb[0].mxu0
        %v989 = vadd.f32 0.0, %v988
        %v990 = vpop.f32.mrb[0].mxu0
        %991 = vdwg.mxu0
        %v992 = vadd.f32 %v919, %v989
        %v993 = vmul.f32 %v992, 0.5
        %v994 = vtanh.pop %v993
        %v995 = vadd.f32 %v994, 1.0
        %v996 = vmul.f32 %v995, 0.5
        %v997 = vtanh.pop %v992
        %v998 = vmul.f32 %v996, %v902
        %1000 = vrot.lane.b32.xlu0 %v997, 96
        %v1001 = vpop.permute.xlu0 %1000
        %v1003 = vmul.f32 %v996, %v1001
        %1005 = vrot.lane.b32.xlu0 %v1003, 16
        %v1006 = vpop.permute.xlu0 %1005
        %v1008 = vadd.f32 %v998, %v1006
        %v1009 = vtanh.pop %v1008
        %1011 = vrot.lane.b32.xlu0 %v1009, 32
        %v1012 = vpop.permute.xlu0 %1011
        %v1014 = vmul.f32 %v996, %v1012
        %1016 = vrot.lane.b32.xlu0 %v1014, 80
        %v1017 = vpop.permute.xlu0 %1016
        %s1019 = scalar_lea.vmem %s244, %s917 [#allocation9]
        %1020 = vst.msk [vmem:[%s1019] sm:$0x3] %vm378, %v1017
        %s1021 = smul.u32 %s381, 7
        %s1022 = smul.u32 %s1021, 2
        %s1023 = scalar_lea.vmem %s210, %s1022 [#allocation4]
        %v1024 = vld [vmem:[%s1023] sm:$0x3]
        %v1025 = vsel %vm272, %v1017, 0
        %1027 = vmatprep.subr.mxu0 0.0
        %1028 = vmatpush1.msra.mxu0 %v264
        %1029 = vmatprep.subr.mxu0 0.0
        %1030 = vmatpush1.msra.mxu0 %v265
        %1031 = vmatprep.subr.mxu0 0.0
        %1032 = vmatpush1.msra.mxu0 0.0
        %1033 = vmatprep.subr.mxu0 0.0
        %1034 = vmatpush1.msra.mxu0 0.0
        %1035 = vmatprep.subr.mxu0 0.0
        %1036 = vmatpush1.msra.mxu0 0.0
        %1037 = vmatprep.subr.mxu0 0.0
        %1038 = vmatpush1.msra.mxu0 0.0
        %1039 = vmatprep.subr.mxu0 0.0
        %1040 = vmatpush1.msra.mxu0 0.0
        %1041 = vmatprep.subr.mxu0 0.0
        %1042 = vmatpush1.msra.mxu0 0.0
        %1043 = vmatprep.subr.mxu0 0.0
        %1044 = vmatpush1.msra.mxu0 0.0
        %1045 = vmatprep.subr.mxu0 0.0
        %1046 = vmatpush1.msra.mxu0 0.0
        %1047 = vmatprep.subr.mxu0 0.0
        %1048 = vmatpush1.msra.mxu0 0.0
        %1049 = vmatprep.subr.mxu0 0.0
        %1050 = vmatpush1.msra.mxu0 0.0
        %1051 = vmatprep.subr.mxu0 0.0
        %1052 = vmatpush1.msra.mxu0 0.0
        %1053 = vmatprep.subr.mxu0 0.0
        %1054 = vmatpush1.msra.mxu0 0.0
        %1055 = vmatprep.subr.mxu0 0.0
        %1056 = vmatpush1.msra.mxu0 0.0
        %1057 = vmatprep.subr.mxu0 0.0
        %1058 = vmatpush1.msra.mxu0 0.0
        %1059 = vmatprep.subr.mxu0 0.0
        %1060 = vmatpush1.msra.mxu0 0.0
        %1061 = vmatprep.subr.mxu0 0.0
        %1062 = vmatpush1.msra.mxu0 0.0
        %1063 = vmatprep.subr.mxu0 0.0
        %1064 = vmatpush1.msra.mxu0 0.0
        %1065 = vmatprep.subr.mxu0 0.0
        %1066 = vmatpush1.msra.mxu0 0.0
        %1067 = vmatprep.subr.mxu0 0.0
        %1068 = vmatpush1.msra.mxu0 0.0
        %1069 = vmatprep.subr.mxu0 0.0
        %1070 = vmatpush1.msra.mxu0 0.0
        %1071 = vmatprep.subr.mxu0 0.0
        %1072 = vmatpush1.msra.mxu0 0.0
        %1073 = vmatprep.subr.mxu0 0.0
        %1074 = vmatpush1.msra.mxu0 0.0
        %1075 = vmatprep.subr.mxu0 0.0
        %1076 = vmatpush1.msra.mxu0 0.0
        %1077 = vmatprep.subr.mxu0 0.0
        %1078 = vmatpush1.msra.mxu0 0.0
        %1079 = vmatprep.subr.mxu0 0.0
        %1080 = vmatpush1.msra.mxu0 0.0
        %1081 = vmatprep.subr.mxu0 0.0
        %1082 = vmatpush1.msra.mxu0 0.0
        %1083 = vmatprep.subr.mxu0 0.0
        %1084 = vmatpush1.msra.mxu0 0.0
        %1085 = vmatprep.subr.mxu0 0.0
        %1086 = vmatpush1.msra.mxu0 0.0
        %1087 = vmatprep.subr.mxu0 0.0
        %1088 = vmatpush1.msra.mxu0 0.0
        %1089 = vmatprep.subr.mxu0 0.0
        %1090 = vmatpush1.msra.mxu0 0.0
        %1091 = vmatprep.mubr.f32.mxu0 0.0
        %1092 = vmatmul.mubr.f32.gmra.mrb[0].mxu0 %v1025
        %v1093 = vpop.f32.mrb[0].mxu0
        %v1094 = vadd.f32 0.0, %v1093
        %v1095 = vpop.f32.mrb[0].mxu0
        %1096 = vdwg.mxu0
        %v1097 = vadd.f32 %v1024, %v1094
        %v1098 = vmul.f32 %v1097, 0.5
        %v1099 = vtanh.pop %v1098
        %v1100 = vadd.f32 %v1099, 1.0
        %v1101 = vmul.f32 %v1100, 0.5
        %v1102 = vtanh.pop %v1097
        %v1103 = vmul.f32 %v1101, %v1008
        %1105 = vrot.lane.b32.xlu0 %v1102, 96
        %v1106 = vpop.permute.xlu0 %1105
        %v1108 = vmul.f32 %v1101, %v1106
        %1110 = vrot.lane.b32.xlu0 %v1108, 16
        %v1111 = vpop.permute.xlu0 %1110
        %v1113 = vadd.f32 %v1103, %v1111
        %v1114 = vtanh.pop %v1113
        %1116 = vrot.lane.b32.xlu0 %v1114, 32
        %v1117 = vpop.permute.xlu0 %1116
        %v1119 = vmul.f32 %v1101, %v1117
        %1121 = vrot.lane.b32.xlu0 %v1119, 80
        %v1122 = vpop.permute.xlu0 %1121
        %s1124 = scalar_lea.vmem %s244, %s1022 [#allocation9]
        %1125 = vst.msk [vmem:[%s1124] sm:$0x3] %vm378, %v1122
        %1126 = vst.msk [vmem:[#allocation2] sm:$0x3] %vm378, %v1122
        %1128 = vrot.lane.b32.xlu0 %v1113, 112
        %v1129 = vpop.permute.xlu0 %1128
        %1131 = vst.msk [vmem:[#allocation3] sm:$0x3] %vm378, %v1129
        %s1132 = sand.u32 %s118, 1
        %s1133 = scalar_lea.sflag [#allocation6], %s1132
        %s1134 = sand.u32 %s118, 1
        %s1135 = smul.addr %s1134, 16
        %s1136 = scalar_lea.vmem [#allocation9], %s1135
        // Predicated region
        $region41: #{tpu_custom_call.1} parent=27 // pred_check
          %p1137 = pneg %p128
        $region42: #{tpu_custom_call.1} parent=27 // pred_check_branch
          %1139 = sbr.rel (%p1137) target = $region44
        $region43: #{tpu_custom_call.1} parent=27 // pred_region
          %s1140 = ssub.s32 0, %s27
          %s1141 = smul.u32 %s26, %s1140
          %s1142 = ssub.s32 1, %s26
          %s1143 = smul.u32 %s1142, %s27
          %s1144 = sadd.s32 %s1141, %s1143
          %s1145 = smul.u32 8, %s1144
          %s1147 = ssub.s32 256, 256
          %1148 = vsyncadd %s1133, %s1147
          %s1149 = smul.addr %s26, 8
          %s1150 = sadd.s32 %s1145, %s1149
          %s1151 = smul.addr %s1150, 32
          %s1152 = scalar_lea.hbm %s2, %s1151
          %s1153 = sshll.u32 %s1136, 4
          %s1154 = int_to_ptr.vmem [resolvable:$true] %s1153
          %1159 = dma.vmem_to_hbm [thread:$0]  %s1154, 256, %s1152, %s1133, 32, 32, 2
        $region44: #{tpu_custom_call.1} parent=27 // pred_fallthru
          _
      $region28: #{tpu_custom_call.1} parent=5 // pred_fallthru
        _
      %p1160 = scmp.le.s32.totalorder 2, %s17
      // Predicated region
      $region45: #{tpu_custom_call.1} parent=5 // pred_check
        %p1161 = pneg %p1160
      $region46: #{tpu_custom_call.1} parent=5 // pred_check_branch
        %1163 = sbr.rel (%p1161) target = $region48
      $region47: #{tpu_custom_call.1} parent=5 // pred_region
        %s1164 = ssub.s32 %s17, 2
        // Predicated region
        $region49: #{tpu_custom_call.1} parent=47 // pred_check
          %p1165 = pneg %p134
        $region50: #{tpu_custom_call.1} parent=47 // pred_check_branch
          %1167 = sbr.rel (%p1165) target = $region52
        $region51: #{tpu_custom_call.1} parent=47 // pred_region
          %s1168 = sand.u32 %s119, 1
          %s1169 = scalar_lea.sflag [#allocation6], %s1168
          %s1170 = sand.u32 %s119, 1
          %s1171 = smul.addr %s1170, 16
          %s1172 = scalar_lea.vmem [#allocation9], %s1171
          %1173 = dma.done %s1169, 256
        $region52: #{tpu_custom_call.1} parent=47 // pred_fallthru
          _
      $region48: #{tpu_custom_call.1} parent=5 // pred_fallthru
        _
    $region6: #{tpu_custom_call.1} parent=1 // loop_footer
      %s21 = sadd.s32 1, %s17
    $region7: #{tpu_custom_call.1} parent=1 // loop_footer_branch
      %16 = sbr.rel target = $region3
    $region8: #{tpu_custom_call.1} parent=1 // loop_exit
      _
    %1174 = vsyncpa [#allocation5], 1
    %s1175 = scalar_lea.sflag [#allocation5], 1
    %1176 = vsyncpa %s1175, 1
    %1177 = vsyncpa [#allocation8], 1
    %s1178 = scalar_lea.sflag [#allocation8], 1
    %1179 = vsyncpa %s1178, 1
    %1180 = vsyncpa [#allocation6], 1
    %s1181 = scalar_lea.sflag [#allocation6], 1
    %1182 = vsyncpa %s1181, 1

</llo_original>
